<compile_context>
chip_gen: v6e
topology: v6e:2x2x1
jax: 0.10.0
libtpu: 0.0.40
codegen_flags: <defaults>
</compile_context>

<pallas_src>
import functools
import math

import jax
import jax.numpy as jnp
import numpy as np
from jax.experimental import pallas as pl
from jax.experimental.pallas import tpu as pltpu


# ----------------------------------------------------------------------------
# Fused kernel: QKV projection + RoPE + attention + output projection
# ----------------------------------------------------------------------------

def _fused_self_attention_kernel(x_ref, w_qkv_ref, b_qkv_ref, w_o_ref, b_o_ref,
                                 cos_ref, sin_ref, o_ref, *, n_heads, d_head):
    """One grid step == one batch element.

    Shapes per step:
      x_ref     : (1, L, H)   bf16
      w_qkv_ref : (H, 3H)     bf16   [Wq*1/sqrt(D) | Wk | Wv]
      b_qkv_ref : (1, 3H)     f32    [bq*1/sqrt(D) | bk | bv]
      w_o_ref   : (H, H)      bf16
      b_o_ref   : (1, H)      f32
      cos_ref   : (L, D/2)    f32
      sin_ref   : (L, D/2)    f32
      o_ref     : (1, L, H)   f32
    """
    H = n_heads * d_head
    half = d_head // 2

    x = x_ref[0]                                                     # (L, H) bf16

    # Fused Q|K|V projection: ONE MXU matmul, bf16 in / f32 accumulate.
    qkv = jnp.dot(x, w_qkv_ref[...], preferred_element_type=jnp.float32)
    qkv = qkv + b_qkv_ref[...]                                       # (L, 3H) f32

    cos = cos_ref[...]                                               # (L, D/2) f32
    sin = sin_ref[...]

    def rope(t):
        # Canonical NeoX/LLaMA half-split rotary embedding on a (L, D) tile.
        t1, t2 = t[:, :half], t[:, half:]
        return jnp.concatenate([t1 * cos - t2 * sin,
                                t2 * cos + t1 * sin], axis=1)

    # Per-head attention (static unroll — each head is an independent pair of
    # MXU matmuls; q is already scaled by 1/sqrt(D) via the packed weights).
    # TODO(synk): flash-style online-softmax KV tiling for large L.
    a_heads = []
    for h in range(n_heads):
        lo = h * d_head
        q_h = rope(qkv[:, 0 * H + lo:0 * H + lo + d_head]).astype(jnp.bfloat16)
        k_h = rope(qkv[:, 1 * H + lo:1 * H + lo + d_head]).astype(jnp.bfloat16)
        v_h = qkv[:, 2 * H + lo:2 * H + lo + d_head].astype(jnp.bfloat16)

        # q @ k^T expressed as a contraction over D (no explicit transpose).
        s = jax.lax.dot_general(q_h, k_h, (((1,), (1,)), ((), ())),
                                preferred_element_type=jnp.float32)  # (L, L)
        s = s - jnp.max(s, axis=-1, keepdims=True)
        p = jnp.exp(s)                                               # f32 (v5e-safe)
        p = p / jnp.sum(p, axis=-1, keepdims=True)
        a_h = jnp.dot(p.astype(jnp.bfloat16), v_h,
                      preferred_element_type=jnp.float32)            # (L, D)
        a_heads.append(a_h.astype(jnp.bfloat16))

    # Head reduction fused into the output projection: (L, nh*D) @ (H, H);
    # the cross-head sum happens inside the MXU accumulation chain.
    a = jnp.concatenate(a_heads, axis=1)                             # (L, H) bf16
    out = jnp.dot(a, w_o_ref[...], preferred_element_type=jnp.float32)
    out = out + b_o_ref[...]                                         # (L, H) f32

    # Lane-dense when H % 128 == 0 (realistic sizes); masked but tiny at H=32.
    o_ref[0] = out.astype(o_ref.dtype)


# ----------------------------------------------------------------------------
# Host-side glue: RoPE tables, parameter packing, forward pass
# ----------------------------------------------------------------------------

def rope_tables(L, d_head):
    """Half-split RoPE tables of shape (L, d_head // 2)."""
    inv_freq = 1.0 / (10000.0 ** (np.arange(0, d_head, 2, dtype=np.float32) / d_head))
    ang = np.arange(L, dtype=np.float32)[:, None] * inv_freq[None, :]   # (L, D/2)
    return jnp.asarray(np.cos(ang), jnp.float32), jnp.asarray(np.sin(ang), jnp.float32)


def make_spectral_linear(key_w, key_b, hidden):
    """Deterministic synthetic spectral-norm Linear params (stored as (in, out))."""
    w_pt = jax.random.normal(key_w, (hidden, hidden), jnp.float32) * 0.05  # (out, in)
    sigma = float(np.linalg.svd(np.asarray(w_pt), compute_uv=False)[0])
    w_sn = w_pt / sigma                                                    # spectral norm
    b = jax.random.normal(key_b, (hidden,), jnp.float32) * 0.01
    return jnp.asarray(w_sn).T, b                                          # (in, out), (out,)


def prepare_fused_params(params, n_heads):
    """Pack Q|K|V into one (H, 3H) bf16 matrix; fold 1/sqrt(D) into the Q part."""
    H = params["wq"].shape[0]
    D = H // n_heads
    scale = 1.0 / math.sqrt(D)
    w_qkv = jnp.concatenate([params["wq"] * scale, params["wk"], params["wv"]],
                            axis=1).astype(jnp.bfloat16)                  # (H, 3H)
    b_qkv = jnp.concatenate([params["bq"] * scale, params["bk"], params["bv"]],
                            axis=0).reshape(1, 3 * H).astype(jnp.float32)  # (1, 3H)
    w_o = params["wo"].astype(jnp.bfloat16)                                # (H, H)
    b_o = params["bo"].reshape(1, H).astype(jnp.float32)                   # (1, H)
    return w_qkv, b_qkv, w_o, b_o


def self_attention_forward(x, params, n_heads):
    """Pallas-backed fused forward of SelfAttention (mask=None, dropout=0)."""
    B, L, H = x.shape
    D = H // n_heads
    assert H % n_heads == 0 and D % 2 == 0
    half = D // 2

    w_qkv, b_qkv, w_o, b_o = prepare_fused_params(params, n_heads)
    cos, sin = rope_tables(L, D)
    x_bf16 = x.astype(jnp.bfloat16)   # halve activation HBM->VMEM DMA traffic

    flops = B * (2 * L * H * 3 * H                 # fused QKV projection
                 + 2 * 2 * n_heads * L * L * D     # q@k^T and p@v
                 + 2 * L * H * H)                  # output projection
    transcendentals = B * n_heads * L * L          # exp
    bytes_accessed = (B * L * H * (2 + 4)                         # x bf16 in + out f32
                      + (w_qkv.size + w_o.size) * 2               # bf16 weights
                      + (b_qkv.size + b_o.size + 2 * L * half) * 4)

    kernel = functools.partial(_fused_self_attention_kernel,
                               n_heads=n_heads, d_head=D)

    out = pl.pallas_call(
        kernel,
        grid=(B,),
        out_shape=jax.ShapeDtypeStruct((B, L, H), jnp.float32),
        in_specs=[
            pl.BlockSpec((1, L, H), lambda b: (b, 0, 0)),         # x (bf16)
            pl.BlockSpec((H, 3 * H), lambda b: (0, 0)),           # w_qkv (grid-invariant)
            pl.BlockSpec((1, 3 * H), lambda b: (0, 0)),           # b_qkv
            pl.BlockSpec((H, H), lambda b: (0, 0)),               # w_o
            pl.BlockSpec((1, H), lambda b: (0, 0)),               # b_o
            pl.BlockSpec((L, half), lambda b: (0, 0)),            # cos
            pl.BlockSpec((L, half), lambda b: (0, 0)),            # sin
        ],
        out_specs=pl.BlockSpec((1, L, H), lambda b: (b, 0, 0)),
        compiler_params=pltpu.CompilerParams(
            dimension_semantics=("parallel",),
            vmem_limit_bytes=32 * 1024 * 1024,
        ),
        cost_estimate=pl.CostEstimate(
            flops=int(flops),
            transcendentals=int(transcendentals),
            bytes_accessed=int(bytes_accessed),
        ),
    )(x_bf16, w_qkv, b_qkv, w_o, b_o, cos, sin)
    return out


# ----------------------------------------------------------------------------
# Pure-JAX f32 reference (for correctness check)
# ----------------------------------------------------------------------------

def reference_forward(x, params, n_heads):
    B, L, H = x.shape
    D = H // n_heads
    half = D // 2
    cos, sin = rope_tables(L, D)
    cos_f = jnp.concatenate([cos, cos], axis=-1)   # (L, D)
    sin_f = jnp.concatenate([sin, sin], axis=-1)

    def rotate_half(t):
        return jnp.concatenate([-t[..., half:], t[..., :half]], axis=-1)

    def rope(t):  # (B, L, nh, D)
        c = cos_f[None, :, None, :]
        s = sin_f[None, :, None, :]
        return t * c + rotate_half(t) * s

    q = x @ params["wq"] + params["bq"]
    k = x @ params["wk"] + params["bk"]
    v = x @ params["wv"] + params["bv"]

    q = rope(q.reshape(B, L, n_heads, D)).transpose(0, 2, 1, 3)
    k = rope(k.reshape(B, L, n_heads, D)).transpose(0, 2, 1, 3)
    v = v.reshape(B, L, n_heads, D).transpose(0, 2, 1, 3)

    s = jnp.einsum("bhqd,bhkd->bhqk", q, k) / math.sqrt(D)
    p = jax.nn.softmax(s, axis=-1)
    a = jnp.einsum("bhqk,bhkd->bhqd", p, v)
    a = a.transpose(0, 2, 1, 3).reshape(B, L, H)
    return a @ params["wo"] + params["bo"]


# ----------------------------------------------------------------------------
# Main
# ----------------------------------------------------------------------------

if __name__ == "__main__":
    B, L, H, n_heads = 2, 8, 32, 4   # hidden=32, d_head=8

    key = jax.random.PRNGKey(0)
    keys = jax.random.split(key, 9)
    x = jax.random.normal(keys[0], (B, L, H), jnp.float32)

    params = {}
    for i, name in enumerate(["q", "k", "v", "o"]):
        w, b = make_spectral_linear(keys[1 + 2 * i], keys[2 + 2 * i], H)
        params["w" + name] = w
        params["b" + name] = b

    out = self_attention_forward(x, params, n_heads)
    out = jax.block_until_ready(out)

    ref = reference_forward(x, params, n_heads)
    assert out.shape == (B, L, H)
    # Tolerance loosened vs pure-f32: the kernel feeds the MXU bf16 operands
    # (with f32 accumulation) and casts the activations to bf16 on input.
    assert np.allclose(np.asarray(out), np.asarray(ref), rtol=2e-2, atol=2e-2), (
        "Pallas output does not match JAX reference"
    )

    print("KERNEL_OK")
</pallas_src>

<mosaic_0001>
module attributes {stable_mosaic.version = 11 : i64} {
  func.func @_fused_self_attention_kernel(%arg0: i32, %arg1: memref<1x8x32xbf16, #tpu.memory_space<vmem>>, %arg2: memref<32x96xbf16, #tpu.memory_space<vmem>>, %arg3: memref<1x96xf32, #tpu.memory_space<vmem>>, %arg4: memref<32x32xbf16, #tpu.memory_space<vmem>>, %arg5: memref<1x32xf32, #tpu.memory_space<vmem>>, %arg6: memref<8x4xf32, #tpu.memory_space<vmem>>, %arg7: memref<8x4xf32, #tpu.memory_space<vmem>>, %arg8: memref<1x8x32xf32, #tpu.memory_space<vmem>>) attributes {dimension_semantics = [#tpu.dimension_semantics<parallel>], iteration_bounds = array<i64: 2>, scalar_prefetch = 0 : i64, scratch_operands = 0 : i64, tpu.core_type = #tpu.core_type<tc>, window_params = [{transform_indices = @transform_0, window_bounds = array<i64: 1, 8, 32>}, {pipeline_mode = #tpu.pipeline_mode<synchronous>, transform_indices = @transform_1, window_bounds = array<i64: 32, 96>}, {pipeline_mode = #tpu.pipeline_mode<synchronous>, transform_indices = @transform_2, window_bounds = array<i64: 1, 96>}, {pipeline_mode = #tpu.pipeline_mode<synchronous>, transform_indices = @transform_3, window_bounds = array<i64: 32, 32>}, {pipeline_mode = #tpu.pipeline_mode<synchronous>, transform_indices = @transform_4, window_bounds = array<i64: 1, 32>}, {pipeline_mode = #tpu.pipeline_mode<synchronous>, transform_indices = @transform_5, window_bounds = array<i64: 8, 4>}, {pipeline_mode = #tpu.pipeline_mode<synchronous>, transform_indices = @transform_6, window_bounds = array<i64: 8, 4>}, {transform_indices = @transform_7, window_bounds = array<i64: 1, 8, 32>}]} {
    %c0 = arith.constant 0 : index
    %c0_0 = arith.constant 0 : index
    %c0_1 = arith.constant 0 : index
    %0 = vector.load %arg1[%c0, %c0_0, %c0_1] : memref<1x8x32xbf16, #tpu.memory_space<vmem>>, vector<1x8x32xbf16>
    %1 = vector.shape_cast %0 : vector<1x8x32xbf16> to vector<8x32xbf16>
    %c0_2 = arith.constant 0 : index
    %c0_3 = arith.constant 0 : index
    %2 = vector.load %arg2[%c0_2, %c0_3] : memref<32x96xbf16, #tpu.memory_space<vmem>>, vector<32x96xbf16>
    %cst = arith.constant dense<0.000000e+00> : vector<8x96xf32>
    %3 = tpu.matmul %1, %2, %cst {dimension_numbers = #tpu.dot_dimension_numbers<[1], [0], [0], [1], [0, 0, 1, 1], [], []>} : vector<8x32xbf16>, vector<32x96xbf16>, vector<8x96xf32> -> vector<8x96xf32>
    %c0_4 = arith.constant 0 : index
    %c0_5 = arith.constant 0 : index
    %4 = vector.load %arg3[%c0_4, %c0_5] : memref<1x96xf32, #tpu.memory_space<vmem>>, vector<1x96xf32>
    %5 = vector.broadcast %4 : vector<1x96xf32> to vector<8x96xf32>
    %6 = arith.addf %3, %5 : vector<8x96xf32>
    %c0_6 = arith.constant 0 : index
    %c0_7 = arith.constant 0 : index
    %7 = vector.load %arg6[%c0_6, %c0_7] : memref<8x4xf32, #tpu.memory_space<vmem>>, vector<8x4xf32>
    %c0_8 = arith.constant 0 : index
    %c0_9 = arith.constant 0 : index
    %8 = vector.load %arg7[%c0_8, %c0_9] : memref<8x4xf32, #tpu.memory_space<vmem>>, vector<8x4xf32>
    %9 = vector.extract_strided_slice %6 {offsets = [0, 0], sizes = [8, 8], strides = [1, 1]} : vector<8x96xf32> to vector<8x8xf32>
    %10 = vector.extract_strided_slice %9 {offsets = [0, 0], sizes = [8, 4], strides = [1, 1]} : vector<8x8xf32> to vector<8x4xf32>
    %11 = vector.extract_strided_slice %9 {offsets = [0, 4], sizes = [8, 4], strides = [1, 1]} : vector<8x8xf32> to vector<8x4xf32>
    %12 = arith.mulf %10, %7 : vector<8x4xf32>
    %13 = arith.mulf %11, %8 : vector<8x4xf32>
    %14 = arith.subf %12, %13 : vector<8x4xf32>
    %15 = arith.mulf %11, %7 : vector<8x4xf32>
    %16 = arith.mulf %10, %8 : vector<8x4xf32>
    %17 = arith.addf %15, %16 : vector<8x4xf32>
    %18 = tpu.concatenate %14, %17 in 1 : vector<8x4xf32>, vector<8x4xf32> -> vector<8x8xf32>
    %19 = arith.truncf %18 : vector<8x8xf32> to vector<8x8xbf16>
    %20 = vector.extract_strided_slice %6 {offsets = [0, 32], sizes = [8, 8], strides = [1, 1]} : vector<8x96xf32> to vector<8x8xf32>
    %21 = vector.extract_strided_slice %20 {offsets = [0, 0], sizes = [8, 4], strides = [1, 1]} : vector<8x8xf32> to vector<8x4xf32>
    %22 = vector.extract_strided_slice %20 {offsets = [0, 4], sizes = [8, 4], strides = [1, 1]} : vector<8x8xf32> to vector<8x4xf32>
    %23 = arith.mulf %21, %7 : vector<8x4xf32>
    %24 = arith.mulf %22, %8 : vector<8x4xf32>
    %25 = arith.subf %23, %24 : vector<8x4xf32>
    %26 = arith.mulf %22, %7 : vector<8x4xf32>
    %27 = arith.mulf %21, %8 : vector<8x4xf32>
    %28 = arith.addf %26, %27 : vector<8x4xf32>
    %29 = tpu.concatenate %25, %28 in 1 : vector<8x4xf32>, vector<8x4xf32> -> vector<8x8xf32>
    %30 = arith.truncf %29 : vector<8x8xf32> to vector<8x8xbf16>
    %31 = vector.extract_strided_slice %6 {offsets = [0, 64], sizes = [8, 8], strides = [1, 1]} : vector<8x96xf32> to vector<8x8xf32>
    %32 = arith.truncf %31 : vector<8x8xf32> to vector<8x8xbf16>
    %cst_10 = arith.constant dense<0.000000e+00> : vector<8x8xf32>
    %33 = tpu.matmul %19, %30, %cst_10 {dimension_numbers = #tpu.dot_dimension_numbers<[1], [1], [0], [0], [0, 0, 1, 0], [], []>} : vector<8x8xbf16>, vector<8x8xbf16>, vector<8x8xf32> -> vector<8x8xf32>
    %cst_11 = arith.constant dense<0xFF800000> : vector<8xf32>
    %34 = vector.multi_reduction <maximumf>, %33, %cst_11 [1] : vector<8x8xf32> to vector<8xf32>
    %35 = vector.shape_cast %34 : vector<8xf32> to vector<8x1xf32>
    %36 = vector.broadcast %35 : vector<8x1xf32> to vector<8x8xf32>
    %37 = arith.subf %33, %36 : vector<8x8xf32>
    %38 = math.exp %37 : vector<8x8xf32>
    %cst_12 = arith.constant dense<0.000000e+00> : vector<8xf32>
    %39 = vector.multi_reduction <add>, %38, %cst_12 [1] : vector<8x8xf32> to vector<8xf32>
    %40 = vector.shape_cast %39 : vector<8xf32> to vector<8x1xf32>
    %41 = vector.broadcast %40 : vector<8x1xf32> to vector<8x8xf32>
    %42 = arith.divf %38, %41 : vector<8x8xf32>
    %43 = arith.truncf %42 : vector<8x8xf32> to vector<8x8xbf16>
    %cst_13 = arith.constant dense<0.000000e+00> : vector<8x8xf32>
    %44 = tpu.matmul %43, %32, %cst_13 {dimension_numbers = #tpu.dot_dimension_numbers<[1], [0], [0], [1], [0, 0, 1, 1], [], []>} : vector<8x8xbf16>, vector<8x8xbf16>, vector<8x8xf32> -> vector<8x8xf32>
    %45 = arith.truncf %44 : vector<8x8xf32> to vector<8x8xbf16>
    %46 = vector.extract_strided_slice %6 {offsets = [0, 8], sizes = [8, 8], strides = [1, 1]} : vector<8x96xf32> to vector<8x8xf32>
    %47 = vector.extract_strided_slice %46 {offsets = [0, 0], sizes = [8, 4], strides = [1, 1]} : vector<8x8xf32> to vector<8x4xf32>
    %48 = vector.extract_strided_slice %46 {offsets = [0, 4], sizes = [8, 4], strides = [1, 1]} : vector<8x8xf32> to vector<8x4xf32>
    %49 = arith.mulf %47, %7 : vector<8x4xf32>
    %50 = arith.mulf %48, %8 : vector<8x4xf32>
    %51 = arith.subf %49, %50 : vector<8x4xf32>
    %52 = arith.mulf %48, %7 : vector<8x4xf32>
    %53 = arith.mulf %47, %8 : vector<8x4xf32>
    %54 = arith.addf %52, %53 : vector<8x4xf32>
    %55 = tpu.concatenate %51, %54 in 1 : vector<8x4xf32>, vector<8x4xf32> -> vector<8x8xf32>
    %56 = arith.truncf %55 : vector<8x8xf32> to vector<8x8xbf16>
    %57 = vector.extract_strided_slice %6 {offsets = [0, 40], sizes = [8, 8], strides = [1, 1]} : vector<8x96xf32> to vector<8x8xf32>
    %58 = vector.extract_strided_slice %57 {offsets = [0, 0], sizes = [8, 4], strides = [1, 1]} : vector<8x8xf32> to vector<8x4xf32>
    %59 = vector.extract_strided_slice %57 {offsets = [0, 4], sizes = [8, 4], strides = [1, 1]} : vector<8x8xf32> to vector<8x4xf32>
    %60 = arith.mulf %58, %7 : vector<8x4xf32>
    %61 = arith.mulf %59, %8 : vector<8x4xf32>
    %62 = arith.subf %60, %61 : vector<8x4xf32>
    %63 = arith.mulf %59, %7 : vector<8x4xf32>
    %64 = arith.mulf %58, %8 : vector<8x4xf32>
    %65 = arith.addf %63, %64 : vector<8x4xf32>
    %66 = tpu.concatenate %62, %65 in 1 : vector<8x4xf32>, vector<8x4xf32> -> vector<8x8xf32>
    %67 = arith.truncf %66 : vector<8x8xf32> to vector<8x8xbf16>
    %68 = vector.extract_strided_slice %6 {offsets = [0, 72], sizes = [8, 8], strides = [1, 1]} : vector<8x96xf32> to vector<8x8xf32>
    %69 = arith.truncf %68 : vector<8x8xf32> to vector<8x8xbf16>
    %cst_14 = arith.constant dense<0.000000e+00> : vector<8x8xf32>
    %70 = tpu.matmul %56, %67, %cst_14 {dimension_numbers = #tpu.dot_dimension_numbers<[1], [1], [0], [0], [0, 0, 1, 0], [], []>} : vector<8x8xbf16>, vector<8x8xbf16>, vector<8x8xf32> -> vector<8x8xf32>
    %cst_15 = arith.constant dense<0xFF800000> : vector<8xf32>
    %71 = vector.multi_reduction <maximumf>, %70, %cst_15 [1] : vector<8x8xf32> to vector<8xf32>
    %72 = vector.shape_cast %71 : vector<8xf32> to vector<8x1xf32>
    %73 = vector.broadcast %72 : vector<8x1xf32> to vector<8x8xf32>
    %74 = arith.subf %70, %73 : vector<8x8xf32>
    %75 = math.exp %74 : vector<8x8xf32>
    %cst_16 = arith.constant dense<0.000000e+00> : vector<8xf32>
    %76 = vector.multi_reduction <add>, %75, %cst_16 [1] : vector<8x8xf32> to vector<8xf32>
    %77 = vector.shape_cast %76 : vector<8xf32> to vector<8x1xf32>
    %78 = vector.broadcast %77 : vector<8x1xf32> to vector<8x8xf32>
    %79 = arith.divf %75, %78 : vector<8x8xf32>
    %80 = arith.truncf %79 : vector<8x8xf32> to vector<8x8xbf16>
    %cst_17 = arith.constant dense<0.000000e+00> : vector<8x8xf32>
    %81 = tpu.matmul %80, %69, %cst_17 {dimension_numbers = #tpu.dot_dimension_numbers<[1], [0], [0], [1], [0, 0, 1, 1], [], []>} : vector<8x8xbf16>, vector<8x8xbf16>, vector<8x8xf32> -> vector<8x8xf32>
    %82 = arith.truncf %81 : vector<8x8xf32> to vector<8x8xbf16>
    %83 = vector.extract_strided_slice %6 {offsets = [0, 16], sizes = [8, 8], strides = [1, 1]} : vector<8x96xf32> to vector<8x8xf32>
    %84 = vector.extract_strided_slice %83 {offsets = [0, 0], sizes = [8, 4], strides = [1, 1]} : vector<8x8xf32> to vector<8x4xf32>
    %85 = vector.extract_strided_slice %83 {offsets = [0, 4], sizes = [8, 4], strides = [1, 1]} : vector<8x8xf32> to vector<8x4xf32>
    %86 = arith.mulf %84, %7 : vector<8x4xf32>
    %87 = arith.mulf %85, %8 : vector<8x4xf32>
    %88 = arith.subf %86, %87 : vector<8x4xf32>
    %89 = arith.mulf %85, %7 : vector<8x4xf32>
    %90 = arith.mulf %84, %8 : vector<8x4xf32>
    %91 = arith.addf %89, %90 : vector<8x4xf32>
    %92 = tpu.concatenate %88, %91 in 1 : vector<8x4xf32>, vector<8x4xf32> -> vector<8x8xf32>
    %93 = arith.truncf %92 : vector<8x8xf32> to vector<8x8xbf16>
    %94 = vector.extract_strided_slice %6 {offsets = [0, 48], sizes = [8, 8], strides = [1, 1]} : vector<8x96xf32> to vector<8x8xf32>
    %95 = vector.extract_strided_slice %94 {offsets = [0, 0], sizes = [8, 4], strides = [1, 1]} : vector<8x8xf32> to vector<8x4xf32>
    %96 = vector.extract_strided_slice %94 {offsets = [0, 4], sizes = [8, 4], strides = [1, 1]} : vector<8x8xf32> to vector<8x4xf32>
    %97 = arith.mulf %95, %7 : vector<8x4xf32>
    %98 = arith.mulf %96, %8 : vector<8x4xf32>
    %99 = arith.subf %97, %98 : vector<8x4xf32>
    %100 = arith.mulf %96, %7 : vector<8x4xf32>
    %101 = arith.mulf %95, %8 : vector<8x4xf32>
    %102 = arith.addf %100, %101 : vector<8x4xf32>
    %103 = tpu.concatenate %99, %102 in 1 : vector<8x4xf32>, vector<8x4xf32> -> vector<8x8xf32>
    %104 = arith.truncf %103 : vector<8x8xf32> to vector<8x8xbf16>
    %105 = vector.extract_strided_slice %6 {offsets = [0, 80], sizes = [8, 8], strides = [1, 1]} : vector<8x96xf32> to vector<8x8xf32>
    %106 = arith.truncf %105 : vector<8x8xf32> to vector<8x8xbf16>
    %cst_18 = arith.constant dense<0.000000e+00> : vector<8x8xf32>
    %107 = tpu.matmul %93, %104, %cst_18 {dimension_numbers = #tpu.dot_dimension_numbers<[1], [1], [0], [0], [0, 0, 1, 0], [], []>} : vector<8x8xbf16>, vector<8x8xbf16>, vector<8x8xf32> -> vector<8x8xf32>
    %cst_19 = arith.constant dense<0xFF800000> : vector<8xf32>
    %108 = vector.multi_reduction <maximumf>, %107, %cst_19 [1] : vector<8x8xf32> to vector<8xf32>
    %109 = vector.shape_cast %108 : vector<8xf32> to vector<8x1xf32>
    %110 = vector.broadcast %109 : vector<8x1xf32> to vector<8x8xf32>
    %111 = arith.subf %107, %110 : vector<8x8xf32>
    %112 = math.exp %111 : vector<8x8xf32>
    %cst_20 = arith.constant dense<0.000000e+00> : vector<8xf32>
    %113 = vector.multi_reduction <add>, %112, %cst_20 [1] : vector<8x8xf32> to vector<8xf32>
    %114 = vector.shape_cast %113 : vector<8xf32> to vector<8x1xf32>
    %115 = vector.broadcast %114 : vector<8x1xf32> to vector<8x8xf32>
    %116 = arith.divf %112, %115 : vector<8x8xf32>
    %117 = arith.truncf %116 : vector<8x8xf32> to vector<8x8xbf16>
    %cst_21 = arith.constant dense<0.000000e+00> : vector<8x8xf32>
    %118 = tpu.matmul %117, %106, %cst_21 {dimension_numbers = #tpu.dot_dimension_numbers<[1], [0], [0], [1], [0, 0, 1, 1], [], []>} : vector<8x8xbf16>, vector<8x8xbf16>, vector<8x8xf32> -> vector<8x8xf32>
    %119 = arith.truncf %118 : vector<8x8xf32> to vector<8x8xbf16>
    %120 = vector.extract_strided_slice %6 {offsets = [0, 24], sizes = [8, 8], strides = [1, 1]} : vector<8x96xf32> to vector<8x8xf32>
    %121 = vector.extract_strided_slice %120 {offsets = [0, 0], sizes = [8, 4], strides = [1, 1]} : vector<8x8xf32> to vector<8x4xf32>
    %122 = vector.extract_strided_slice %120 {offsets = [0, 4], sizes = [8, 4], strides = [1, 1]} : vector<8x8xf32> to vector<8x4xf32>
    %123 = arith.mulf %121, %7 : vector<8x4xf32>
    %124 = arith.mulf %122, %8 : vector<8x4xf32>
    %125 = arith.subf %123, %124 : vector<8x4xf32>
    %126 = arith.mulf %122, %7 : vector<8x4xf32>
    %127 = arith.mulf %121, %8 : vector<8x4xf32>
    %128 = arith.addf %126, %127 : vector<8x4xf32>
    %129 = tpu.concatenate %125, %128 in 1 : vector<8x4xf32>, vector<8x4xf32> -> vector<8x8xf32>
    %130 = arith.truncf %129 : vector<8x8xf32> to vector<8x8xbf16>
    %131 = vector.extract_strided_slice %6 {offsets = [0, 56], sizes = [8, 8], strides = [1, 1]} : vector<8x96xf32> to vector<8x8xf32>
    %132 = vector.extract_strided_slice %131 {offsets = [0, 0], sizes = [8, 4], strides = [1, 1]} : vector<8x8xf32> to vector<8x4xf32>
    %133 = vector.extract_strided_slice %131 {offsets = [0, 4], sizes = [8, 4], strides = [1, 1]} : vector<8x8xf32> to vector<8x4xf32>
    %134 = arith.mulf %132, %7 : vector<8x4xf32>
    %135 = arith.mulf %133, %8 : vector<8x4xf32>
    %136 = arith.subf %134, %135 : vector<8x4xf32>
    %137 = arith.mulf %133, %7 : vector<8x4xf32>
    %138 = arith.mulf %132, %8 : vector<8x4xf32>
    %139 = arith.addf %137, %138 : vector<8x4xf32>
    %140 = tpu.concatenate %136, %139 in 1 : vector<8x4xf32>, vector<8x4xf32> -> vector<8x8xf32>
    %141 = arith.truncf %140 : vector<8x8xf32> to vector<8x8xbf16>
    %142 = vector.extract_strided_slice %6 {offsets = [0, 88], sizes = [8, 8], strides = [1, 1]} : vector<8x96xf32> to vector<8x8xf32>
    %143 = arith.truncf %142 : vector<8x8xf32> to vector<8x8xbf16>
    %cst_22 = arith.constant dense<0.000000e+00> : vector<8x8xf32>
    %144 = tpu.matmul %130, %141, %cst_22 {dimension_numbers = #tpu.dot_dimension_numbers<[1], [1], [0], [0], [0, 0, 1, 0], [], []>} : vector<8x8xbf16>, vector<8x8xbf16>, vector<8x8xf32> -> vector<8x8xf32>
    %cst_23 = arith.constant dense<0xFF800000> : vector<8xf32>
    %145 = vector.multi_reduction <maximumf>, %144, %cst_23 [1] : vector<8x8xf32> to vector<8xf32>
    %146 = vector.shape_cast %145 : vector<8xf32> to vector<8x1xf32>
    %147 = vector.broadcast %146 : vector<8x1xf32> to vector<8x8xf32>
    %148 = arith.subf %144, %147 : vector<8x8xf32>
    %149 = math.exp %148 : vector<8x8xf32>
    %cst_24 = arith.constant dense<0.000000e+00> : vector<8xf32>
    %150 = vector.multi_reduction <add>, %149, %cst_24 [1] : vector<8x8xf32> to vector<8xf32>
    %151 = vector.shape_cast %150 : vector<8xf32> to vector<8x1xf32>
    %152 = vector.broadcast %151 : vector<8x1xf32> to vector<8x8xf32>
    %153 = arith.divf %149, %152 : vector<8x8xf32>
    %154 = arith.truncf %153 : vector<8x8xf32> to vector<8x8xbf16>
    %cst_25 = arith.constant dense<0.000000e+00> : vector<8x8xf32>
    %155 = tpu.matmul %154, %143, %cst_25 {dimension_numbers = #tpu.dot_dimension_numbers<[1], [0], [0], [1], [0, 0, 1, 1], [], []>} : vector<8x8xbf16>, vector<8x8xbf16>, vector<8x8xf32> -> vector<8x8xf32>
    %156 = arith.truncf %155 : vector<8x8xf32> to vector<8x8xbf16>
    %157 = tpu.concatenate %45, %82, %119, %156 in 1 : vector<8x8xbf16>, vector<8x8xbf16>, vector<8x8xbf16>, vector<8x8xbf16> -> vector<8x32xbf16>
    %c0_26 = arith.constant 0 : index
    %c0_27 = arith.constant 0 : index
    %158 = vector.load %arg4[%c0_26, %c0_27] : memref<32x32xbf16, #tpu.memory_space<vmem>>, vector<32x32xbf16>
    %cst_28 = arith.constant dense<0.000000e+00> : vector<8x32xf32>
    %159 = tpu.matmul %157, %158, %cst_28 {dimension_numbers = #tpu.dot_dimension_numbers<[1], [0], [0], [1], [0, 0, 1, 1], [], []>} : vector<8x32xbf16>, vector<32x32xbf16>, vector<8x32xf32> -> vector<8x32xf32>
    %c0_29 = arith.constant 0 : index
    %c0_30 = arith.constant 0 : index
    %160 = vector.load %arg5[%c0_29, %c0_30] : memref<1x32xf32, #tpu.memory_space<vmem>>, vector<1x32xf32>
    %161 = vector.broadcast %160 : vector<1x32xf32> to vector<8x32xf32>
    %162 = arith.addf %159, %161 : vector<8x32xf32>
    %c0_31 = arith.constant 0 : index
    %c0_32 = arith.constant 0 : index
    %c0_33 = arith.constant 0 : index
    %163 = vector.load %arg8[%c0_31, %c0_32, %c0_33] : memref<1x8x32xf32, #tpu.memory_space<vmem>>, vector<1x8x32xf32>
    %164 = vector.shape_cast %163 : vector<1x8x32xf32> to vector<8x32xf32>
    %165 = vector.shape_cast %162 : vector<8x32xf32> to vector<1x8x32xf32>
    tpu.vector_store %arg8[%c0_31, %c0_32, %c0_33], %165 {strides = array<i32>} : memref<1x8x32xf32, #tpu.memory_space<vmem>>, vector<1x8x32xf32>,
    return
  }
  func.func @transform_0(%arg0: i32) -> (i32, i32, i32) {
    %c0_i32 = arith.constant 0 : i32
    %c0_i32_0 = arith.constant 0 : i32
    %c0_i32_1 = arith.constant 0 : i32
    return %arg0, %c0_i32, %c0_i32_0 : i32, i32, i32
  }
  func.func @transform_1(%arg0: i32) -> (i32, i32) {
    %c0_i32 = arith.constant 0 : i32
    %c0_i32_0 = arith.constant 0 : i32
    %c0_i32_1 = arith.constant 0 : i32
    return %c0_i32, %c0_i32_0 : i32, i32
  }
  func.func @transform_2(%arg0: i32) -> (i32, i32) {
    %c0_i32 = arith.constant 0 : i32
    %c0_i32_0 = arith.constant 0 : i32
    %c0_i32_1 = arith.constant 0 : i32
    return %c0_i32, %c0_i32_0 : i32, i32
  }
  func.func @transform_3(%arg0: i32) -> (i32, i32) {
    %c0_i32 = arith.constant 0 : i32
    %c0_i32_0 = arith.constant 0 : i32
    %c0_i32_1 = arith.constant 0 : i32
    return %c0_i32, %c0_i32_0 : i32, i32
  }
  func.func @transform_4(%arg0: i32) -> (i32, i32) {
    %c0_i32 = arith.constant 0 : i32
    %c0_i32_0 = arith.constant 0 : i32
    %c0_i32_1 = arith.constant 0 : i32
    return %c0_i32, %c0_i32_0 : i32, i32
  }
  func.func @transform_5(%arg0: i32) -> (i32, i32) {
    %c0_i32 = arith.constant 0 : i32
    %c0_i32_0 = arith.constant 0 : i32
    %c0_i32_1 = arith.constant 0 : i32
    return %c0_i32, %c0_i32_0 : i32, i32
  }
  func.func @transform_6(%arg0: i32) -> (i32, i32) {
    %c0_i32 = arith.constant 0 : i32
    %c0_i32_0 = arith.constant 0 : i32
    %c0_i32_1 = arith.constant 0 : i32
    return %c0_i32, %c0_i32_0 : i32, i32
  }
  func.func @transform_7(%arg0: i32) -> (i32, i32, i32) {
    %c0_i32 = arith.constant 0 : i32
    %c0_i32_0 = arith.constant 0 : i32
    %c0_i32_1 = arith.constant 0 : i32
    return %arg0, %c0_i32, %c0_i32_0 : i32, i32, i32
  }
}

</mosaic_0001>

<llo_original>
// kernel: tpu_custom_call.1
$region0: #{tpu_custom_call.1}
  #allocation0 [shape = 'u32[]', space=smem, size = 0x4, offset = 0x4, fixed_abs, tag = 'smem constant byte address 0x4 - core index']
  #allocation1 [shape = 'u32[144,128]{1,0:T(1,128)}', space=vmem, size = 0x12000, scoped, tag = 'internal scratch']
  %s0 = inlined_call_operand.vmem [shape: bf16[2,8,32], index: 0, kind: input, shape index: {}]
  %s1 = inlined_call_operand.vmem [shape: bf16[32,96], index: 1, kind: input, shape index: {}]
  %s2 = inlined_call_operand.vmem [shape: f32[1,96], index: 2, kind: input, shape index: {}]
  %s3 = inlined_call_operand.hbm [shape: bf16[32,32], index: 3, kind: input, shape index: {}]
  %s4 = inlined_call_operand.hbm [shape: f32[1,32], index: 4, kind: input, shape index: {}]
  %s5 = inlined_call_operand.vmem [shape: f32[8,4], index: 5, kind: input, shape index: {}]
  %s6 = inlined_call_operand.vmem [shape: f32[8,4], index: 6, kind: input, shape index: {}]
  %s7 = inlined_call_operand.hbm [shape: f32[2,8,32], index: 7, kind: output, shape index: {}]
  %s8 = sld [smem:[#allocation0]]
  $region69: #{tpu_custom_call.1} parent=0
    _
  %s10 = ssub.s32 1, %s8
  %s11 = scalar_select 0, %s10, %s8
  $region1: #{tpu_custom_call.1} parent=0
    #allocation2 [shape = 'u8[8192]{0}', space=vmem, size = 0x2000, scoped, tag = 'input window, operand 3, single buffered']
    #allocation3 [shape = 's32[2]{0}', space=sflag, size = 0x8, scoped, tag = 'scoped memory for tpu_custom_call.1']
    #allocation4 [shape = 's32[2]{0}', space=sflag, size = 0x8, scoped, tag = 'scoped memory for tpu_custom_call.1']
    #allocation5 [shape = 'u8[512]{0}', space=vmem, size = 0x400, scoped, tag = 'input window, operand 4, single buffered']
    #allocation6 [shape = 's32[1]{0}', space=sflag, size = 0x4, scoped, tag = 'scoped memory for tpu_custom_call.1']
    #allocation7 [shape = 'u8[8192]{0}', space=vmem, size = 0x2000, scoped, tag = 'output window, operand 0']
    %12 = vsyncpa [#allocation3], 0
    %13 = vsyncpa [#allocation6], 0
    %14 = vsyncpa [#allocation4], 0
    %s15 = scalar_lea.sflag [#allocation4], 1
    %16 = vsyncpa %s15, 0
    loop: start=0, step=1, limit=4
    $region2: #{tpu_custom_call.1} parent=1 // loop_pre_header
      _
    $region3: #{tpu_custom_call.1} parent=1 // loop_header
      %s18 = sphi 0, %s22
      %p19 = scmp.ge.s32.totalorder %s18, 4
      %s28 = sphi 0, %s30
      %s31 = sphi 0, %s28
      %s32 = sphi 0, %s31
      %s48 = sphi 0, %s32
      %s52 = sphi 0, %s52
      %s54 = sphi 0, %s52
      %s55 = sphi 0, %s54
      %s69 = sphi 0, %s55
      %s73 = sphi 0, %s73
      %s75 = sphi 0, %s73
      %s76 = sphi 0, %s75
      %s90 = sphi 0, %s76
      %s94 = sphi 0, %s94
      %s96 = sphi 0, %s94
      %s97 = sphi 0, %s96
      %s111 = sphi 0, %s97
      %s115 = sphi 0, %s115
      %s117 = sphi 0, %s115
      %s118 = sphi 0, %s117
      %s132 = sphi 0, %s118
      %s136 = sphi 0, %s136
      %s138 = sphi 0, %s136
      %s139 = sphi 0, %s138
      %s153 = sphi 0, %s139
      %s157 = sphi 0, %s157
      %s159 = sphi 0, %s157
      %s160 = sphi 0, %s159
      %s174 = sphi 0, %s160
      %s180 = sphi 0, %s182
      %s183 = sphi 0, %s180
      %s184 = sphi 0, %s183
      %s200 = sphi 0, %s184
    $region4: #{tpu_custom_call.1} parent=1 // loop_header_branch
      %21 = sbr.rel (%p19) target = $region8
    $region5: #{tpu_custom_call.1} parent=1 // loop_body
      %s23 = ssub.s32 %s18, 1
      %s24 = ssub.s32 %s18, 2
      %s25 = sadd.s32 %s18, 1
      %s26 = ssub.s32 %s18, %s25
      %p27 = scmp.eq.s32.totalorder %s26, 0
      %s29 = sadd.s32 %s28, 1
      %s30 = scalar_select %p27, %s28, %s29
      %p33 = pneg %p27
      %p34 = scmp.eq.s32.totalorder %s18, 1
      %p35 = por %p33, %p34
      %p36 = scmp.ne.s32.totalorder %s28, %s31
      %p37 = scmp.eq.s32.totalorder %s18, 0
      %p38 = por %p36, %p37
      %p39 = scmp.ne.s32.totalorder %s28, %s31
      %p40 = scmp.eq.s32.totalorder %s23, 1
      %p41 = por %p39, %p40
      %p42 = scmp.ne.s32.totalorder %s31, %s32
      %p43 = scmp.eq.s32.totalorder %s23, 0
      %p44 = por %p42, %p43
      %p45 = scmp.ne.s32.totalorder %s31, %s32
      %p46 = scmp.eq.s32.totalorder %s24, 1
      %p47 = por %p45, %p46
      %p49 = scmp.ne.s32.totalorder %s32, %s48
      %p50 = scmp.eq.s32.totalorder %s24, 0
      %p51 = por %p49, %p50
      %s53 = sadd.s32 %s52, 1
      %p56 = scmp.eq.s32.totalorder %s18, 1
      %p57 = scmp.ne.s32.totalorder %s52, %s54
      %p58 = scmp.eq.s32.totalorder %s18, 0
      %p59 = por %p57, %p58
      %p60 = scmp.ne.s32.totalorder %s52, %s54
      %p61 = scmp.eq.s32.totalorder %s23, 1
      %p62 = por %p60, %p61
      %p63 = scmp.ne.s32.totalorder %s54, %s55
      %p64 = scmp.eq.s32.totalorder %s23, 0
      %p65 = por %p63, %p64
      %p66 = scmp.ne.s32.totalorder %s54, %s55
      %p67 = scmp.eq.s32.totalorder %s24, 1
      %p68 = por %p66, %p67
      %p70 = scmp.ne.s32.totalorder %s55, %s69
      %p71 = scmp.eq.s32.totalorder %s24, 0
      %p72 = por %p70, %p71
      %s74 = sadd.s32 %s73, 1
      %p77 = scmp.eq.s32.totalorder %s18, 1
      %p78 = scmp.ne.s32.totalorder %s73, %s75
      %p79 = scmp.eq.s32.totalorder %s18, 0
      %p80 = por %p78, %p79
      %p81 = scmp.ne.s32.totalorder %s73, %s75
      %p82 = scmp.eq.s32.totalorder %s23, 1
      %p83 = por %p81, %p82
      %p84 = scmp.ne.s32.totalorder %s75, %s76
      %p85 = scmp.eq.s32.totalorder %s23, 0
      %p86 = por %p84, %p85
      %p87 = scmp.ne.s32.totalorder %s75, %s76
      %p88 = scmp.eq.s32.totalorder %s24, 1
      %p89 = por %p87, %p88
      %p91 = scmp.ne.s32.totalorder %s76, %s90
      %p92 = scmp.eq.s32.totalorder %s24, 0
      %p93 = por %p91, %p92
      %s95 = sadd.s32 %s94, 1
      %p98 = scmp.eq.s32.totalorder %s18, 1
      %p99 = scmp.ne.s32.totalorder %s94, %s96
      %p100 = scmp.eq.s32.totalorder %s18, 0
      %p101 = por %p99, %p100
      %p102 = scmp.ne.s32.totalorder %s94, %s96
      %p103 = scmp.eq.s32.totalorder %s23, 1
      %p104 = por %p102, %p103
      %p105 = scmp.ne.s32.totalorder %s96, %s97
      %p106 = scmp.eq.s32.totalorder %s23, 0
      %p107 = por %p105, %p106
      %p108 = scmp.ne.s32.totalorder %s96, %s97
      %p109 = scmp.eq.s32.totalorder %s24, 1
      %p110 = por %p108, %p109
      %p112 = scmp.ne.s32.totalorder %s97, %s111
      %p113 = scmp.eq.s32.totalorder %s24, 0
      %p114 = por %p112, %p113
      %s116 = sadd.s32 %s115, 1
      %p119 = scmp.eq.s32.totalorder %s18, 1
      %p120 = scmp.ne.s32.totalorder %s115, %s117
      %p121 = scmp.eq.s32.totalorder %s18, 0
      %p122 = por %p120, %p121
      %p123 = scmp.ne.s32.totalorder %s115, %s117
      %p124 = scmp.eq.s32.totalorder %s23, 1
      %p125 = por %p123, %p124
      %p126 = scmp.ne.s32.totalorder %s117, %s118
      %p127 = scmp.eq.s32.totalorder %s23, 0
      %p128 = por %p126, %p127
      %p129 = scmp.ne.s32.totalorder %s117, %s118
      %p130 = scmp.eq.s32.totalorder %s24, 1
      %p131 = por %p129, %p130
      %p133 = scmp.ne.s32.totalorder %s118, %s132
      %p134 = scmp.eq.s32.totalorder %s24, 0
      %p135 = por %p133, %p134
      %s137 = sadd.s32 %s136, 1
      %p140 = scmp.eq.s32.totalorder %s18, 1
      %p141 = scmp.ne.s32.totalorder %s136, %s138
      %p142 = scmp.eq.s32.totalorder %s18, 0
      %p143 = por %p141, %p142
      %p144 = scmp.ne.s32.totalorder %s136, %s138
      %p145 = scmp.eq.s32.totalorder %s23, 1
      %p146 = por %p144, %p145
      %p147 = scmp.ne.s32.totalorder %s138, %s139
      %p148 = scmp.eq.s32.totalorder %s23, 0
      %p149 = por %p147, %p148
      %p150 = scmp.ne.s32.totalorder %s138, %s139
      %p151 = scmp.eq.s32.totalorder %s24, 1
      %p152 = por %p150, %p151
      %p154 = scmp.ne.s32.totalorder %s139, %s153
      %p155 = scmp.eq.s32.totalorder %s24, 0
      %p156 = por %p154, %p155
      %s158 = sadd.s32 %s157, 1
      %p161 = scmp.eq.s32.totalorder %s18, 1
      %p162 = scmp.ne.s32.totalorder %s157, %s159
      %p163 = scmp.eq.s32.totalorder %s18, 0
      %p164 = por %p162, %p163
      %p165 = scmp.ne.s32.totalorder %s157, %s159
      %p166 = scmp.eq.s32.totalorder %s23, 1
      %p167 = por %p165, %p166
      %p168 = scmp.ne.s32.totalorder %s159, %s160
      %p169 = scmp.eq.s32.totalorder %s23, 0
      %p170 = por %p168, %p169
      %p171 = scmp.ne.s32.totalorder %s159, %s160
      %p172 = scmp.eq.s32.totalorder %s24, 1
      %p173 = por %p171, %p172
      %p175 = scmp.ne.s32.totalorder %s160, %s174
      %p176 = scmp.eq.s32.totalorder %s24, 0
      %p177 = por %p175, %p176
      %s178 = ssub.s32 %s18, %s25
      %p179 = scmp.eq.s32.totalorder %s178, 0
      %s181 = sadd.s32 %s180, 1
      %s182 = scalar_select %p179, %s180, %s181
      %p185 = pneg %p179
      %p186 = scmp.eq.s32.totalorder %s18, 1
      %p187 = por %p185, %p186
      %p188 = scmp.ne.s32.totalorder %s180, %s183
      %p189 = scmp.eq.s32.totalorder %s18, 0
      %p190 = por %p188, %p189
      %p191 = scmp.ne.s32.totalorder %s180, %s183
      %p192 = scmp.eq.s32.totalorder %s23, 1
      %p193 = por %p191, %p192
      %p194 = scmp.ne.s32.totalorder %s183, %s184
      %p195 = scmp.eq.s32.totalorder %s23, 0
      %p196 = por %p194, %p195
      %p197 = scmp.ne.s32.totalorder %s183, %s184
      %p198 = scmp.eq.s32.totalorder %s24, 1
      %p199 = por %p197, %p198
      %p201 = scmp.ne.s32.totalorder %s184, %s200
      %p202 = scmp.eq.s32.totalorder %s24, 0
      %p203 = por %p201, %p202
      %p204 = scmp.le.s32.totalorder 1, %s18
      %p205 = scmp.lt.s32.totalorder %s18, 3
      %p206 = pnand %p204, %p205
      %p207 = pneg %p206
      // Predicated region
      $region9: #{tpu_custom_call.1} parent=5 // pred_check
        _
      $region10: #{tpu_custom_call.1} parent=5 // pred_check_branch
        %209 = sbr.rel (%p206) target = $region12
      $region11: #{tpu_custom_call.1} parent=5 // pred_region
        %s210 = ssub.s32 %s18, 1
        // Predicated region
        $region13: #{tpu_custom_call.1} parent=11 // pred_check
          %p211 = pneg %p65
        $region14: #{tpu_custom_call.1} parent=11 // pred_check_branch
          %213 = sbr.rel (%p211) target = $region16
        $region15: #{tpu_custom_call.1} parent=11 // pred_region
          _
        $region16: #{tpu_custom_call.1} parent=11 // pred_fallthru
          _
        // Predicated region
        $region17: #{tpu_custom_call.1} parent=11 // pred_check
          %p214 = pneg %p86
        $region18: #{tpu_custom_call.1} parent=11 // pred_check_branch
          %216 = sbr.rel (%p214) target = $region20
        $region19: #{tpu_custom_call.1} parent=11 // pred_region
          _
        $region20: #{tpu_custom_call.1} parent=11 // pred_fallthru
          _
        // Predicated region
        $region21: #{tpu_custom_call.1} parent=11 // pred_check
          %p217 = pneg %p107
        $region22: #{tpu_custom_call.1} parent=11 // pred_check_branch
          %219 = sbr.rel (%p217) target = $region24
        $region23: #{tpu_custom_call.1} parent=11 // pred_region
          %s221 = ssub.s32 256, 256
          %222 = vsyncadd [#allocation3], %s221
          %s223 = sshll.u32 [#allocation2], 4
          %s224 = int_to_ptr.vmem [resolvable:$true] %s223
          %229 = dma.hbm_to_vmem [thread:$0]  %s3, 256, %s224, [#allocation3], 64, 64, 4
        $region24: #{tpu_custom_call.1} parent=11 // pred_fallthru
          _
        // Predicated region
        $region25: #{tpu_custom_call.1} parent=11 // pred_check
          %p230 = pneg %p128
        $region26: #{tpu_custom_call.1} parent=11 // pred_check_branch
          %232 = sbr.rel (%p230) target = $region28
        $region27: #{tpu_custom_call.1} parent=11 // pred_region
          %s234 = ssub.s32 16, 16
          %235 = vsyncadd [#allocation6], %s234
          %s237 = sshll.u32 [#allocation5], 4
          %s238 = int_to_ptr.vmem [resolvable:$true] %s237
          %240 = dma.hbm_to_vmem [thread:$0]  %s4, 16, %s238, [#allocation6]
        $region28: #{tpu_custom_call.1} parent=11 // pred_fallthru
          _
        // Predicated region
        $region29: #{tpu_custom_call.1} parent=11 // pred_check
          %p241 = pneg %p149
        $region30: #{tpu_custom_call.1} parent=11 // pred_check_branch
          %243 = sbr.rel (%p241) target = $region32
        $region31: #{tpu_custom_call.1} parent=11 // pred_region
          _
        $region32: #{tpu_custom_call.1} parent=11 // pred_fallthru
          _
        // Predicated region
        $region33: #{tpu_custom_call.1} parent=11 // pred_check
          %p244 = pneg %p170
        $region34: #{tpu_custom_call.1} parent=11 // pred_check_branch
          %246 = sbr.rel (%p244) target = $region36
        $region35: #{tpu_custom_call.1} parent=11 // pred_region
          _
        $region36: #{tpu_custom_call.1} parent=11 // pred_fallthru
          _
      $region12: #{tpu_custom_call.1} parent=5 // pred_fallthru
        _
      %p247 = scmp.lt.s32.totalorder %s18, 2
      // Predicated region
      $region37: #{tpu_custom_call.1} parent=5 // pred_check
        %p248 = pneg %p247
      $region38: #{tpu_custom_call.1} parent=5 // pred_check_branch
        %250 = sbr.rel (%p248) target = $region40
      $region39: #{tpu_custom_call.1} parent=5 // pred_region
        // Predicated region
        $region41: #{tpu_custom_call.1} parent=39 // pred_check
          %p251 = pneg %p38
        $region42: #{tpu_custom_call.1} parent=39 // pred_check_branch
          %253 = sbr.rel (%p251) target = $region44
        $region43: #{tpu_custom_call.1} parent=39 // pred_region
          %p254 = scmp.lt.s32.totalorder %s18, 1
          %s255 = scalar_select %p254, %s18, 1
          %s256 = smul.addr %s255, 4
          %s257 = scalar_lea.vmem %s0, %s256
        $region44: #{tpu_custom_call.1} parent=39 // pred_fallthru
          _
      $region40: #{tpu_custom_call.1} parent=5 // pred_fallthru
        _
      %p258 = scmp.le.s32.totalorder 1, %s18
      %p259 = scmp.lt.s32.totalorder %s18, 3
      %p260 = pnand %p258, %p259
      %p261 = pneg %p260
      // Predicated region
      $region45: #{tpu_custom_call.1} parent=5 // pred_check
        _
      $region46: #{tpu_custom_call.1} parent=5 // pred_check_branch
        %263 = sbr.rel (%p260) target = $region48
      $region47: #{tpu_custom_call.1} parent=5 // pred_region
        %s264 = ssub.s32 %s18, 1
        // Predicated region
        $region49: #{tpu_custom_call.1} parent=47 // pred_check
          %p265 = pneg %p107
        $region50: #{tpu_custom_call.1} parent=47 // pred_check_branch
          %267 = sbr.rel (%p265) target = $region52
        $region51: #{tpu_custom_call.1} parent=47 // pred_region
          %268 = dma.done [#allocation3], 256
        $region52: #{tpu_custom_call.1} parent=47 // pred_fallthru
          _
        // Predicated region
        $region53: #{tpu_custom_call.1} parent=47 // pred_check
          %p269 = pneg %p128
        $region54: #{tpu_custom_call.1} parent=47 // pred_check_branch
          %271 = sbr.rel (%p269) target = $region56
        $region55: #{tpu_custom_call.1} parent=47 // pred_region
          %272 = dma.done [#allocation6], 16
        $region56: #{tpu_custom_call.1} parent=47 // pred_fallthru
          _
        %p273 = scmp.lt.s32.totalorder %s23, 1
        %s274 = scalar_select %p273, %s23, 1
        %s275 = smul.addr %s274, 4
        %s276 = scalar_lea.vmem %s0, %s275
        %p277 = pneg %p44
        %p278 = pneg %p41
        %p279 = pneg %p65
        %p280 = pneg %p62
        %p281 = pneg %p86
        %p282 = pneg %p83
        %p283 = pneg %p107
        %p284 = pneg %p104
        %p285 = pneg %p128
        %p286 = pneg %p125
        %p287 = pneg %p149
        %p288 = pneg %p146
        %p289 = pneg %p170
        %p290 = pneg %p167
        %p291 = pneg %p196
        %p292 = pneg %p193
        %s293 = sand.u32 %s183, 1
        %s294 = scalar_lea.sflag [#allocation4], %s293
        %s295 = sand.u32 %s183, 1
        %s296 = smul.addr %s295, 8
        %s297 = scalar_lea.vmem [#allocation7], %s296
        %p298 = scmp.lt.s32.totalorder %s23, 1
        %s299 = scalar_select %p298, %s23, 1
        %s300 = smul.addr %s299, 4
        %s301 = scalar_lea.vmem %s0, %s300
        %v303 = vld [vmem:[%s301] sm:$0xf]
        %v304 = vld [vmem:[%s1] sm:$0xf]
        %v305 = vld [vmem:[%s1 + $0x4] sm:$0xf]
        %v306 = vld [vmem:[%s1 + $0x8] sm:$0xf]
        %v307 = vld [vmem:[%s1 + $0xc] sm:$0xf]
        %v308 = vld [vmem:[%s2] sm:$0x1]
        %v310 = vlaneseq
        %v311 = vshrl.u32 %v310, 7
        %v312 = vsub.s32 0, %v311
        %v313 = vrot.slane %v308, %v312
        %v319 = vunpack.c.l.b16 %v304
        %v320 = vunpack.c.l.b16 %v305
        %v321 = vunpack.c.l.b16 %v306
        %v322 = vunpack.c.l.b16 %v307
        %v323 = vpack.c.b16 %v320, %v319
        %v324 = vpack.c.b16 %v322, %v321
        %vm327 = vcmask 261120
        %v329 = vsel %vm327, %v303, 0
        %331 = vmatprep.subr.bf16.mxu0 0
        %332 = vmatpush1.bf16.msra.mxu0 0
        %333 = vmatprep.subr.bf16.mxu0 0
        %334 = vmatpush1.bf16.msra.mxu0 0
        %335 = vmatprep.subr.bf16.mxu0 0
        %336 = vmatpush1.bf16.msra.mxu0 0
        %337 = vmatprep.subr.bf16.mxu0 0
        %338 = vmatpush1.bf16.msra.mxu0 0
        %339 = vmatprep.subr.bf16.mxu0 0
        %340 = vmatpush1.bf16.msra.mxu0 0
        %341 = vmatprep.subr.bf16.mxu0 0
        %342 = vmatpush1.bf16.msra.mxu0 0
        %343 = vmatprep.subr.bf16.mxu0 0
        %344 = vmatpush1.bf16.msra.mxu0 %v324
        %345 = vmatprep.subr.bf16.mxu0 0
        %346 = vmatpush1.bf16.msra.mxu0 %v323
        %347 = vmatprep.subr.bf16.mxu0 0
        %348 = vmatpush2.bf16.msra.mxu0 0
        %349 = vmatprep.subr.bf16.mxu0 0
        %350 = vmatpush2.bf16.msra.mxu0 0
        %351 = vmatprep.subr.bf16.mxu0 0
        %352 = vmatpush2.bf16.msra.mxu0 0
        %353 = vmatprep.subr.bf16.mxu0 0
        %354 = vmatpush2.bf16.msra.mxu0 0
        %355 = vmatprep.subr.bf16.mxu0 0
        %356 = vmatpush2.bf16.msra.mxu0 0
        %357 = vmatprep.subr.bf16.mxu0 0
        %358 = vmatpush2.bf16.msra.mxu0 0
        %359 = vmatprep.subr.bf16.mxu0 0
        %360 = vmatpush2.bf16.msra.mxu0 0
        %361 = vmatprep.subr.bf16.mxu0 0
        %362 = vmatpush2.bf16.msra.mxu0 0
        %363 = vmatprep.mubr.bf16.mxu0 0
        %364 = vmatmul.mubr.bf16.gmra.mxu0 %v329
        %v365 = vpop.f32.mrf.mxu0
        %v366 = vadd.f32 %v313, %v365
        %v367 = vpop.f32.mrf.mxu0
        %v368 = vpop.f32.mrf.mxu0
        %v369 = vpop.f32.mrf.mxu0
        %370 = vdwg.mxu0
        %v371 = vld [vmem:[%s5] sm:$0xff]
        %v372 = vld [vmem:[%s6] sm:$0xff]
        %v373 = vmul.f32 %v366, %v371
        %375 = vrot.lane.b32.xlu0 %v372, 4
        %v376 = vpop.permute.xlu0 %375
        %v378 = vmul.f32 %v366, %v376
        %380 = vrot.lane.b32.xlu0 %v378, 124
        %v381 = vpop.permute.xlu0 %380
        %v383 = vsub.f32 %v373, %v381
        %385 = vrot.lane.b32.xlu0 %v371, 4
        %v386 = vpop.permute.xlu0 %385
        %v388 = vmul.f32 %v366, %v386
        %v389 = vmul.f32 %v366, %v372
        %391 = vrot.lane.b32.xlu0 %v389, 4
        %v392 = vpop.permute.xlu0 %391
        %v394 = vadd.f32 %v388, %v392
        %vm395 = vcmask 31744
        %v396 = vsel %vm395, %v383, %v394
        %v397 = vpack.c.bf16 %v396, %v396
        %398 = vrot.lane.b32.xlu0 %v371, 32
        %v399 = vpop.permute.xlu0 %398
        %v401 = vmul.f32 %v366, %v399
        %402 = vrot.lane.b32.xlu0 %v372, 36
        %v403 = vpop.permute.xlu0 %402
        %v405 = vmul.f32 %v366, %v403
        %407 = vrot.lane.b32.xlu0 %v405, 124
        %v408 = vpop.permute.xlu0 %407
        %v410 = vsub.f32 %v401, %v408
        %411 = vrot.lane.b32.xlu0 %v371, 36
        %v412 = vpop.permute.xlu0 %411
        %v414 = vmul.f32 %v366, %v412
        %415 = vrot.lane.b32.xlu0 %v372, 32
        %v416 = vpop.permute.xlu0 %415
        %v418 = vmul.f32 %v366, %v416
        %420 = vrot.lane.b32.xlu0 %v418, 4
        %v421 = vpop.permute.xlu0 %420
        %v423 = vadd.f32 %v414, %v421
        %425 = vrot.lane.b32.xlu0 %v410, 96
        %v426 = vpop.permute.xlu0 %425
        %429 = vrot.lane.b32.xlu0 %v423, 96
        %v430 = vpop.permute.xlu0 %429
        %v432 = vsel %vm395, %v426, %v430
        %v433 = vpack.c.bf16 %v432, %v432
        %v434 = vpack.c.bf16 %v366, %v366
        %vm435 = vcmask 64512
        %v437 = vsel %vm435, %v397, 0
        %v440 = vsel %vm435, %v433, 0
        %442 = vmatprep.subr.bf16.mxu0 0
        %443 = vmatpush1.bf16.xpose.msra.mxu0 0
        %444 = vmatprep.subr.bf16.mxu0 0
        %445 = vmatpush1.bf16.xpose.msra.mxu0 0
        %446 = vmatprep.subr.bf16.mxu0 0
        %447 = vmatpush1.bf16.xpose.msra.mxu0 0
        %448 = vmatprep.subr.bf16.mxu0 0
        %449 = vmatpush1.bf16.xpose.msra.mxu0 0
        %450 = vmatprep.subr.bf16.mxu0 0
        %451 = vmatpush1.bf16.xpose.msra.mxu0 0
        %452 = vmatprep.subr.bf16.mxu0 0
        %453 = vmatpush1.bf16.xpose.msra.mxu0 0
        %454 = vmatprep.subr.bf16.mxu0 0
        %455 = vmatpush1.bf16.xpose.msra.mxu0 0
        %456 = vmatprep.subr.bf16.mxu0 0
        %457 = vmatpush1.bf16.xpose.msra.mxu0 %v440
        %458 = vmatprep.subr.bf16.mxu0 0
        %459 = vmatpush2.bf16.xpose.msra.mxu0 0
        %460 = vmatprep.subr.bf16.mxu0 0
        %461 = vmatpush2.bf16.xpose.msra.mxu0 0
        %462 = vmatprep.subr.bf16.mxu0 0
        %463 = vmatpush2.bf16.xpose.msra.mxu0 0
        %464 = vmatprep.subr.bf16.mxu0 0
        %465 = vmatpush2.bf16.xpose.msra.mxu0 0
        %466 = vmatprep.subr.bf16.mxu0 0
        %467 = vmatpush2.bf16.xpose.msra.mxu0 0
        %468 = vmatprep.subr.bf16.mxu0 0
        %469 = vmatpush2.bf16.xpose.msra.mxu0 0
        %470 = vmatprep.subr.bf16.mxu0 0
        %471 = vmatpush2.bf16.xpose.msra.mxu0 0
        %472 = vmatprep.subr.bf16.mxu0 0
        %473 = vmatpush2.bf16.xpose.msra.mxu0 0
        %474 = vmatprep.mubr.bf16.mxu0 0
        %475 = vmatmul.mubr.bf16.gmra.mxu0 %v437
        %v476 = vpop.f32.mrf.mxu0
        %v477 = vadd.f32 0.0, %v476
        %v478 = vpop.f32.mrf.mxu0
        %v479 = vpop.f32.mrf.mxu0
        %v480 = vpop.f32.mrf.mxu0
        %481 = vdwg.mxu0
        %v482 = vsel %vm435, %v477, -inf
        %483 = vmax.xlane.f32.xlu0 %v482
        %v484 = vpop.xlane.xlu0 %483
        %v485 = vsub.f32 %v477, %v484
        %v486 = vmul.f32 %v485, 1.442695
        %v487 = vpow.pop %v486
        %v488 = vsel %vm435, %v487, 0.0
        %489 = vadd.xlane.f32.xlu0 %v488
        %v490 = vpop.xlane.xlu0 %489
        %v491 = vrcp.pop %v490
        %v492 = vmul.f32 %v487, %v491
        %v493 = vpack.c.bf16 %v492, %v492
        %495 = vrot.lane.b32.xlu0 %v434, 64
        %v496 = vpop.permute.xlu0 %495
        %v498 = vsel %vm435, %v493, 0
        %vm500 = vcmask 1043456
        %v502 = vsel %vm500, %v496, 0
        %504 = vmatprep.subr.bf16.mxu0 0
        %505 = vmatpush1.bf16.msra.mxu0 0
        %506 = vmatprep.subr.bf16.mxu0 0
        %507 = vmatpush1.bf16.msra.mxu0 0
        %508 = vmatprep.subr.bf16.mxu0 0
        %509 = vmatpush1.bf16.msra.mxu0 0
        %510 = vmatprep.subr.bf16.mxu0 0
        %511 = vmatpush1.bf16.msra.mxu0 0
        %512 = vmatprep.subr.bf16.mxu0 0
        %513 = vmatpush1.bf16.msra.mxu0 0
        %514 = vmatprep.subr.bf16.mxu0 0
        %515 = vmatpush1.bf16.msra.mxu0 0
        %516 = vmatprep.subr.bf16.mxu0 0
        %517 = vmatpush1.bf16.msra.mxu0 0
        %518 = vmatprep.subr.bf16.mxu0 0
        %519 = vmatpush1.bf16.msra.mxu0 %v502
        %520 = vmatprep.subr.bf16.mxu0 0
        %521 = vmatpush2.bf16.msra.mxu0 0
        %522 = vmatprep.subr.bf16.mxu0 0
        %523 = vmatpush2.bf16.msra.mxu0 0
        %524 = vmatprep.subr.bf16.mxu0 0
        %525 = vmatpush2.bf16.msra.mxu0 0
        %526 = vmatprep.subr.bf16.mxu0 0
        %527 = vmatpush2.bf16.msra.mxu0 0
        %528 = vmatprep.subr.bf16.mxu0 0
        %529 = vmatpush2.bf16.msra.mxu0 0
        %530 = vmatprep.subr.bf16.mxu0 0
        %531 = vmatpush2.bf16.msra.mxu0 0
        %532 = vmatprep.subr.bf16.mxu0 0
        %533 = vmatpush2.bf16.msra.mxu0 0
        %534 = vmatprep.subr.bf16.mxu0 0
        %535 = vmatpush2.bf16.msra.mxu0 0
        %536 = vmatprep.mubr.bf16.mxu0 0
        %537 = vmatmul.mubr.bf16.gmra.mxu0 %v498
        %v538 = vpop.f32.mrf.mxu0
        %v539 = vadd.f32 0.0, %v538
        %v540 = vpop.f32.mrf.mxu0
        %v541 = vpop.f32.mrf.mxu0
        %v542 = vpop.f32.mrf.mxu0
        %543 = vdwg.mxu0
        %v544 = vpack.c.bf16 %v539, %v539
        %545 = vrot.lane.b32.xlu0 %v371, 8
        %v546 = vpop.permute.xlu0 %545
        %v548 = vmul.f32 %v366, %v546
        %549 = vrot.lane.b32.xlu0 %v372, 12
        %v550 = vpop.permute.xlu0 %549
        %v552 = vmul.f32 %v366, %v550
        %554 = vrot.lane.b32.xlu0 %v552, 124
        %v555 = vpop.permute.xlu0 %554
        %v557 = vsub.f32 %v548, %v555
        %558 = vrot.lane.b32.xlu0 %v371, 12
        %v559 = vpop.permute.xlu0 %558
        %v561 = vmul.f32 %v366, %v559
        %562 = vrot.lane.b32.xlu0 %v372, 8
        %v563 = vpop.permute.xlu0 %562
        %v565 = vmul.f32 %v366, %v563
        %567 = vrot.lane.b32.xlu0 %v565, 4
        %v568 = vpop.permute.xlu0 %567
        %v570 = vadd.f32 %v561, %v568
        %572 = vrot.lane.b32.xlu0 %v557, 120
        %v573 = vpop.permute.xlu0 %572
        %576 = vrot.lane.b32.xlu0 %v570, 120
        %v577 = vpop.permute.xlu0 %576
        %v579 = vsel %vm395, %v573, %v577
        %v580 = vpack.c.bf16 %v579, %v579
        %581 = vrot.lane.b32.xlu0 %v371, 40
        %v582 = vpop.permute.xlu0 %581
        %v584 = vmul.f32 %v366, %v582
        %585 = vrot.lane.b32.xlu0 %v372, 44
        %v586 = vpop.permute.xlu0 %585
        %v588 = vmul.f32 %v366, %v586
        %590 = vrot.lane.b32.xlu0 %v588, 124
        %v591 = vpop.permute.xlu0 %590
        %v593 = vsub.f32 %v584, %v591
        %594 = vrot.lane.b32.xlu0 %v371, 44
        %v595 = vpop.permute.xlu0 %594
        %v597 = vmul.f32 %v366, %v595
        %598 = vrot.lane.b32.xlu0 %v372, 40
        %v599 = vpop.permute.xlu0 %598
        %v601 = vmul.f32 %v366, %v599
        %603 = vrot.lane.b32.xlu0 %v601, 4
        %v604 = vpop.permute.xlu0 %603
        %v606 = vadd.f32 %v597, %v604
        %608 = vrot.lane.b32.xlu0 %v593, 88
        %v609 = vpop.permute.xlu0 %608
        %612 = vrot.lane.b32.xlu0 %v606, 88
        %v613 = vpop.permute.xlu0 %612
        %v615 = vsel %vm395, %v609, %v613
        %v616 = vpack.c.bf16 %v615, %v615
        %v618 = vsel %vm435, %v580, 0
        %v621 = vsel %vm435, %v616, 0
        %623 = vmatprep.subr.bf16.mxu0 0
        %624 = vmatpush1.bf16.xpose.msra.mxu0 0
        %625 = vmatprep.subr.bf16.mxu0 0
        %626 = vmatpush1.bf16.xpose.msra.mxu0 0
        %627 = vmatprep.subr.bf16.mxu0 0
        %628 = vmatpush1.bf16.xpose.msra.mxu0 0
        %629 = vmatprep.subr.bf16.mxu0 0
        %630 = vmatpush1.bf16.xpose.msra.mxu0 0
        %631 = vmatprep.subr.bf16.mxu0 0
        %632 = vmatpush1.bf16.xpose.msra.mxu0 0
        %633 = vmatprep.subr.bf16.mxu0 0
        %634 = vmatpush1.bf16.xpose.msra.mxu0 0
        %635 = vmatprep.subr.bf16.mxu0 0
        %636 = vmatpush1.bf16.xpose.msra.mxu0 0
        %637 = vmatprep.subr.bf16.mxu0 0
        %638 = vmatpush1.bf16.xpose.msra.mxu0 %v621
        %639 = vmatprep.subr.bf16.mxu0 0
        %640 = vmatpush2.bf16.xpose.msra.mxu0 0
        %641 = vmatprep.subr.bf16.mxu0 0
        %642 = vmatpush2.bf16.xpose.msra.mxu0 0
        %643 = vmatprep.subr.bf16.mxu0 0
        %644 = vmatpush2.bf16.xpose.msra.mxu0 0
        %645 = vmatprep.subr.bf16.mxu0 0
        %646 = vmatpush2.bf16.xpose.msra.mxu0 0
        %647 = vmatprep.subr.bf16.mxu0 0
        %648 = vmatpush2.bf16.xpose.msra.mxu0 0
        %649 = vmatprep.subr.bf16.mxu0 0
        %650 = vmatpush2.bf16.xpose.msra.mxu0 0
        %651 = vmatprep.subr.bf16.mxu0 0
        %652 = vmatpush2.bf16.xpose.msra.mxu0 0
        %653 = vmatprep.subr.bf16.mxu0 0
        %654 = vmatpush2.bf16.xpose.msra.mxu0 0
        %655 = vmatprep.mubr.bf16.mxu0 0
        %656 = vmatmul.mubr.bf16.gmra.mxu0 %v618
        %v657 = vpop.f32.mrf.mxu0
        %v658 = vadd.f32 0.0, %v657
        %v659 = vpop.f32.mrf.mxu0
        %v660 = vpop.f32.mrf.mxu0
        %v661 = vpop.f32.mrf.mxu0
        %662 = vdwg.mxu0
        %v663 = vsel %vm435, %v658, -inf
        %664 = vmax.xlane.f32.xlu0 %v663
        %v665 = vpop.xlane.xlu0 %664
        %v666 = vsub.f32 %v658, %v665
        %v667 = vmul.f32 %v666, 1.442695
        %v668 = vpow.pop %v667
        %v669 = vsel %vm435, %v668, 0.0
        %670 = vadd.xlane.f32.xlu0 %v669
        %v671 = vpop.xlane.xlu0 %670
        %v672 = vrcp.pop %v671
        %v673 = vmul.f32 %v668, %v672
        %v674 = vpack.c.bf16 %v673, %v673
        %675 = vrot.lane.b32.xlu0 %v434, 56
        %v676 = vpop.permute.xlu0 %675
        %v678 = vsel %vm435, %v674, 0
        %v681 = vsel %vm500, %v676, 0
        %683 = vmatprep.subr.bf16.mxu0 0
        %684 = vmatpush1.bf16.msra.mxu0 0
        %685 = vmatprep.subr.bf16.mxu0 0
        %686 = vmatpush1.bf16.msra.mxu0 0
        %687 = vmatprep.subr.bf16.mxu0 0
        %688 = vmatpush1.bf16.msra.mxu0 0
        %689 = vmatprep.subr.bf16.mxu0 0
        %690 = vmatpush1.bf16.msra.mxu0 0
        %691 = vmatprep.subr.bf16.mxu0 0
        %692 = vmatpush1.bf16.msra.mxu0 0
        %693 = vmatprep.subr.bf16.mxu0 0
        %694 = vmatpush1.bf16.msra.mxu0 0
        %695 = vmatprep.subr.bf16.mxu0 0
        %696 = vmatpush1.bf16.msra.mxu0 0
        %697 = vmatprep.subr.bf16.mxu0 0
        %698 = vmatpush1.bf16.msra.mxu0 %v681
        %699 = vmatprep.subr.bf16.mxu0 0
        %700 = vmatpush2.bf16.msra.mxu0 0
        %701 = vmatprep.subr.bf16.mxu0 0
        %702 = vmatpush2.bf16.msra.mxu0 0
        %703 = vmatprep.subr.bf16.mxu0 0
        %704 = vmatpush2.bf16.msra.mxu0 0
        %705 = vmatprep.subr.bf16.mxu0 0
        %706 = vmatpush2.bf16.msra.mxu0 0
        %707 = vmatprep.subr.bf16.mxu0 0
        %708 = vmatpush2.bf16.msra.mxu0 0
        %709 = vmatprep.subr.bf16.mxu0 0
        %710 = vmatpush2.bf16.msra.mxu0 0
        %711 = vmatprep.subr.bf16.mxu0 0
        %712 = vmatpush2.bf16.msra.mxu0 0
        %713 = vmatprep.subr.bf16.mxu0 0
        %714 = vmatpush2.bf16.msra.mxu0 0
        %715 = vmatprep.mubr.bf16.mxu0 0
        %716 = vmatmul.mubr.bf16.gmra.mxu0 %v678
        %v717 = vpop.f32.mrf.mxu0
        %v718 = vadd.f32 0.0, %v717
        %v719 = vpop.f32.mrf.mxu0
        %v720 = vpop.f32.mrf.mxu0
        %v721 = vpop.f32.mrf.mxu0
        %722 = vdwg.mxu0
        %v723 = vpack.c.bf16 %v718, %v718
        %724 = vrot.lane.b32.xlu0 %v371, 16
        %v725 = vpop.permute.xlu0 %724
        %v727 = vmul.f32 %v366, %v725
        %728 = vrot.lane.b32.xlu0 %v372, 20
        %v729 = vpop.permute.xlu0 %728
        %v731 = vmul.f32 %v366, %v729
        %733 = vrot.lane.b32.xlu0 %v731, 124
        %v734 = vpop.permute.xlu0 %733
        %v736 = vsub.f32 %v727, %v734
        %737 = vrot.lane.b32.xlu0 %v371, 20
        %v738 = vpop.permute.xlu0 %737
        %v740 = vmul.f32 %v366, %v738
        %741 = vrot.lane.b32.xlu0 %v372, 16
        %v742 = vpop.permute.xlu0 %741
        %v744 = vmul.f32 %v366, %v742
        %746 = vrot.lane.b32.xlu0 %v744, 4
        %v747 = vpop.permute.xlu0 %746
        %v749 = vadd.f32 %v740, %v747
        %751 = vrot.lane.b32.xlu0 %v736, 112
        %v752 = vpop.permute.xlu0 %751
        %755 = vrot.lane.b32.xlu0 %v749, 112
        %v756 = vpop.permute.xlu0 %755
        %v758 = vsel %vm395, %v752, %v756
        %v759 = vpack.c.bf16 %v758, %v758
        %760 = vrot.lane.b32.xlu0 %v371, 48
        %v761 = vpop.permute.xlu0 %760
        %v763 = vmul.f32 %v366, %v761
        %764 = vrot.lane.b32.xlu0 %v372, 52
        %v765 = vpop.permute.xlu0 %764
        %v767 = vmul.f32 %v366, %v765
        %769 = vrot.lane.b32.xlu0 %v767, 124
        %v770 = vpop.permute.xlu0 %769
        %v772 = vsub.f32 %v763, %v770
        %773 = vrot.lane.b32.xlu0 %v371, 52
        %v774 = vpop.permute.xlu0 %773
        %v776 = vmul.f32 %v366, %v774
        %777 = vrot.lane.b32.xlu0 %v372, 48
        %v778 = vpop.permute.xlu0 %777
        %v780 = vmul.f32 %v366, %v778
        %782 = vrot.lane.b32.xlu0 %v780, 4
        %v783 = vpop.permute.xlu0 %782
        %v785 = vadd.f32 %v776, %v783
        %787 = vrot.lane.b32.xlu0 %v772, 80
        %v788 = vpop.permute.xlu0 %787
        %791 = vrot.lane.b32.xlu0 %v785, 80
        %v792 = vpop.permute.xlu0 %791
        %v794 = vsel %vm395, %v788, %v792
        %v795 = vpack.c.bf16 %v794, %v794
        %v797 = vsel %vm435, %v759, 0
        %v800 = vsel %vm435, %v795, 0
        %802 = vmatprep.subr.bf16.mxu0 0
        %803 = vmatpush1.bf16.xpose.msra.mxu0 0
        %804 = vmatprep.subr.bf16.mxu0 0
        %805 = vmatpush1.bf16.xpose.msra.mxu0 0
        %806 = vmatprep.subr.bf16.mxu0 0
        %807 = vmatpush1.bf16.xpose.msra.mxu0 0
        %808 = vmatprep.subr.bf16.mxu0 0
        %809 = vmatpush1.bf16.xpose.msra.mxu0 0
        %810 = vmatprep.subr.bf16.mxu0 0
        %811 = vmatpush1.bf16.xpose.msra.mxu0 0
        %812 = vmatprep.subr.bf16.mxu0 0
        %813 = vmatpush1.bf16.xpose.msra.mxu0 0
        %814 = vmatprep.subr.bf16.mxu0 0
        %815 = vmatpush1.bf16.xpose.msra.mxu0 0
        %816 = vmatprep.subr.bf16.mxu0 0
        %817 = vmatpush1.bf16.xpose.msra.mxu0 %v800
        %818 = vmatprep.subr.bf16.mxu0 0
        %819 = vmatpush2.bf16.xpose.msra.mxu0 0
        %820 = vmatprep.subr.bf16.mxu0 0
        %821 = vmatpush2.bf16.xpose.msra.mxu0 0
        %822 = vmatprep.subr.bf16.mxu0 0
        %823 = vmatpush2.bf16.xpose.msra.mxu0 0
        %824 = vmatprep.subr.bf16.mxu0 0
        %825 = vmatpush2.bf16.xpose.msra.mxu0 0
        %826 = vmatprep.subr.bf16.mxu0 0
        %827 = vmatpush2.bf16.xpose.msra.mxu0 0
        %828 = vmatprep.subr.bf16.mxu0 0
        %829 = vmatpush2.bf16.xpose.msra.mxu0 0
        %830 = vmatprep.subr.bf16.mxu0 0
        %831 = vmatpush2.bf16.xpose.msra.mxu0 0
        %832 = vmatprep.subr.bf16.mxu0 0
        %833 = vmatpush2.bf16.xpose.msra.mxu0 0
        %834 = vmatprep.mubr.bf16.mxu0 0
        %835 = vmatmul.mubr.bf16.gmra.mxu0 %v797
        %v836 = vpop.f32.mrf.mxu0
        %v837 = vadd.f32 0.0, %v836
        %v838 = vpop.f32.mrf.mxu0
        %v839 = vpop.f32.mrf.mxu0
        %v840 = vpop.f32.mrf.mxu0
        %841 = vdwg.mxu0
        %v842 = vsel %vm435, %v837, -inf
        %843 = vmax.xlane.f32.xlu0 %v842
        %v844 = vpop.xlane.xlu0 %843
        %v845 = vsub.f32 %v837, %v844
        %v846 = vmul.f32 %v845, 1.442695
        %v847 = vpow.pop %v846
        %v848 = vsel %vm435, %v847, 0.0
        %849 = vadd.xlane.f32.xlu0 %v848
        %v850 = vpop.xlane.xlu0 %849
        %v851 = vrcp.pop %v850
        %v852 = vmul.f32 %v847, %v851
        %v853 = vpack.c.bf16 %v852, %v852
        %854 = vrot.lane.b32.xlu0 %v434, 48
        %v855 = vpop.permute.xlu0 %854
        %v857 = vsel %vm435, %v853, 0
        %v860 = vsel %vm500, %v855, 0
        %862 = vmatprep.subr.bf16.mxu0 0
        %863 = vmatpush1.bf16.msra.mxu0 0
        %864 = vmatprep.subr.bf16.mxu0 0
        %865 = vmatpush1.bf16.msra.mxu0 0
        %866 = vmatprep.subr.bf16.mxu0 0
        %867 = vmatpush1.bf16.msra.mxu0 0
        %868 = vmatprep.subr.bf16.mxu0 0
        %869 = vmatpush1.bf16.msra.mxu0 0
        %870 = vmatprep.subr.bf16.mxu0 0
        %871 = vmatpush1.bf16.msra.mxu0 0
        %872 = vmatprep.subr.bf16.mxu0 0
        %873 = vmatpush1.bf16.msra.mxu0 0
        %874 = vmatprep.subr.bf16.mxu0 0
        %875 = vmatpush1.bf16.msra.mxu0 0
        %876 = vmatprep.subr.bf16.mxu0 0
        %877 = vmatpush1.bf16.msra.mxu0 %v860
        %878 = vmatprep.subr.bf16.mxu0 0
        %879 = vmatpush2.bf16.msra.mxu0 0
        %880 = vmatprep.subr.bf16.mxu0 0
        %881 = vmatpush2.bf16.msra.mxu0 0
        %882 = vmatprep.subr.bf16.mxu0 0
        %883 = vmatpush2.bf16.msra.mxu0 0
        %884 = vmatprep.subr.bf16.mxu0 0
        %885 = vmatpush2.bf16.msra.mxu0 0
        %886 = vmatprep.subr.bf16.mxu0 0
        %887 = vmatpush2.bf16.msra.mxu0 0
        %888 = vmatprep.subr.bf16.mxu0 0
        %889 = vmatpush2.bf16.msra.mxu0 0
        %890 = vmatprep.subr.bf16.mxu0 0
        %891 = vmatpush2.bf16.msra.mxu0 0
        %892 = vmatprep.subr.bf16.mxu0 0
        %893 = vmatpush2.bf16.msra.mxu0 0
        %894 = vmatprep.mubr.bf16.mxu0 0
        %895 = vmatmul.mubr.bf16.gmra.mxu0 %v857
        %v896 = vpop.f32.mrf.mxu0
        %v897 = vadd.f32 0.0, %v896
        %v898 = vpop.f32.mrf.mxu0
        %v899 = vpop.f32.mrf.mxu0
        %v900 = vpop.f32.mrf.mxu0
        %901 = vdwg.mxu0
        %v902 = vpack.c.bf16 %v897, %v897
        %903 = vrot.lane.b32.xlu0 %v371, 24
        %v904 = vpop.permute.xlu0 %903
        %v906 = vmul.f32 %v366, %v904
        %907 = vrot.lane.b32.xlu0 %v372, 28
        %v908 = vpop.permute.xlu0 %907
        %v910 = vmul.f32 %v366, %v908
        %912 = vrot.lane.b32.xlu0 %v910, 124
        %v913 = vpop.permute.xlu0 %912
        %v915 = vsub.f32 %v906, %v913
        %916 = vrot.lane.b32.xlu0 %v371, 28
        %v917 = vpop.permute.xlu0 %916
        %v919 = vmul.f32 %v366, %v917
        %920 = vrot.lane.b32.xlu0 %v372, 24
        %v921 = vpop.permute.xlu0 %920
        %v923 = vmul.f32 %v366, %v921
        %925 = vrot.lane.b32.xlu0 %v923, 4
        %v926 = vpop.permute.xlu0 %925
        %v928 = vadd.f32 %v919, %v926
        %930 = vrot.lane.b32.xlu0 %v915, 104
        %v931 = vpop.permute.xlu0 %930
        %934 = vrot.lane.b32.xlu0 %v928, 104
        %v935 = vpop.permute.xlu0 %934
        %v937 = vsel %vm395, %v931, %v935
        %v938 = vpack.c.bf16 %v937, %v937
        %939 = vrot.lane.b32.xlu0 %v371, 56
        %v940 = vpop.permute.xlu0 %939
        %v942 = vmul.f32 %v366, %v940
        %943 = vrot.lane.b32.xlu0 %v372, 60
        %v944 = vpop.permute.xlu0 %943
        %v946 = vmul.f32 %v366, %v944
        %948 = vrot.lane.b32.xlu0 %v946, 124
        %v949 = vpop.permute.xlu0 %948
        %v951 = vsub.f32 %v942, %v949
        %952 = vrot.lane.b32.xlu0 %v371, 60
        %v953 = vpop.permute.xlu0 %952
        %v955 = vmul.f32 %v366, %v953
        %956 = vrot.lane.b32.xlu0 %v372, 56
        %v957 = vpop.permute.xlu0 %956
        %v959 = vmul.f32 %v366, %v957
        %961 = vrot.lane.b32.xlu0 %v959, 4
        %v962 = vpop.permute.xlu0 %961
        %v964 = vadd.f32 %v955, %v962
        %966 = vrot.lane.b32.xlu0 %v951, 72
        %v967 = vpop.permute.xlu0 %966
        %970 = vrot.lane.b32.xlu0 %v964, 72
        %v971 = vpop.permute.xlu0 %970
        %v973 = vsel %vm395, %v967, %v971
        %v974 = vpack.c.bf16 %v973, %v973
        %v976 = vsel %vm435, %v938, 0
        %v979 = vsel %vm435, %v974, 0
        %981 = vmatprep.subr.bf16.mxu0 0
        %982 = vmatpush1.bf16.xpose.msra.mxu0 0
        %983 = vmatprep.subr.bf16.mxu0 0
        %984 = vmatpush1.bf16.xpose.msra.mxu0 0
        %985 = vmatprep.subr.bf16.mxu0 0
        %986 = vmatpush1.bf16.xpose.msra.mxu0 0
        %987 = vmatprep.subr.bf16.mxu0 0
        %988 = vmatpush1.bf16.xpose.msra.mxu0 0
        %989 = vmatprep.subr.bf16.mxu0 0
        %990 = vmatpush1.bf16.xpose.msra.mxu0 0
        %991 = vmatprep.subr.bf16.mxu0 0
        %992 = vmatpush1.bf16.xpose.msra.mxu0 0
        %993 = vmatprep.subr.bf16.mxu0 0
        %994 = vmatpush1.bf16.xpose.msra.mxu0 0
        %995 = vmatprep.subr.bf16.mxu0 0
        %996 = vmatpush1.bf16.xpose.msra.mxu0 %v979
        %997 = vmatprep.subr.bf16.mxu0 0
        %998 = vmatpush2.bf16.xpose.msra.mxu0 0
        %999 = vmatprep.subr.bf16.mxu0 0
        %1000 = vmatpush2.bf16.xpose.msra.mxu0 0
        %1001 = vmatprep.subr.bf16.mxu0 0
        %1002 = vmatpush2.bf16.xpose.msra.mxu0 0
        %1003 = vmatprep.subr.bf16.mxu0 0
        %1004 = vmatpush2.bf16.xpose.msra.mxu0 0
        %1005 = vmatprep.subr.bf16.mxu0 0
        %1006 = vmatpush2.bf16.xpose.msra.mxu0 0
        %1007 = vmatprep.subr.bf16.mxu0 0
        %1008 = vmatpush2.bf16.xpose.msra.mxu0 0
        %1009 = vmatprep.subr.bf16.mxu0 0
        %1010 = vmatpush2.bf16.xpose.msra.mxu0 0
        %1011 = vmatprep.subr.bf16.mxu0 0
        %1012 = vmatpush2.bf16.xpose.msra.mxu0 0
        %1013 = vmatprep.mubr.bf16.mxu0 0
        %1014 = vmatmul.mubr.bf16.gmra.mxu0 %v976
        %v1015 = vpop.f32.mrf.mxu0
        %v1016 = vadd.f32 0.0, %v1015
        %v1017 = vpop.f32.mrf.mxu0
        %v1018 = vpop.f32.mrf.mxu0
        %v1019 = vpop.f32.mrf.mxu0
        %1020 = vdwg.mxu0
        %v1021 = vsel %vm435, %v1016, -inf
        %1022 = vmax.xlane.f32.xlu0 %v1021
        %v1023 = vpop.xlane.xlu0 %1022
        %v1024 = vsub.f32 %v1016, %v1023
        %v1025 = vmul.f32 %v1024, 1.442695
        %v1026 = vpow.pop %v1025
        %v1027 = vsel %vm435, %v1026, 0.0
        %1028 = vadd.xlane.f32.xlu0 %v1027
        %v1029 = vpop.xlane.xlu0 %1028
        %v1030 = vrcp.pop %v1029
        %v1031 = vmul.f32 %v1026, %v1030
        %v1032 = vpack.c.bf16 %v1031, %v1031
        %1033 = vrot.lane.b32.xlu0 %v434, 40
        %v1034 = vpop.permute.xlu0 %1033
        %v1036 = vsel %vm435, %v1032, 0
        %v1039 = vsel %vm500, %v1034, 0
        %1041 = vmatprep.subr.bf16.mxu0 0
        %1042 = vmatpush1.bf16.msra.mxu0 0
        %1043 = vmatprep.subr.bf16.mxu0 0
        %1044 = vmatpush1.bf16.msra.mxu0 0
        %1045 = vmatprep.subr.bf16.mxu0 0
        %1046 = vmatpush1.bf16.msra.mxu0 0
        %1047 = vmatprep.subr.bf16.mxu0 0
        %1048 = vmatpush1.bf16.msra.mxu0 0
        %1049 = vmatprep.subr.bf16.mxu0 0
        %1050 = vmatpush1.bf16.msra.mxu0 0
        %1051 = vmatprep.subr.bf16.mxu0 0
        %1052 = vmatpush1.bf16.msra.mxu0 0
        %1053 = vmatprep.subr.bf16.mxu0 0
        %1054 = vmatpush1.bf16.msra.mxu0 0
        %1055 = vmatprep.subr.bf16.mxu0 0
        %1056 = vmatpush1.bf16.msra.mxu0 %v1039
        %1057 = vmatprep.subr.bf16.mxu0 0
        %1058 = vmatpush2.bf16.msra.mxu0 0
        %1059 = vmatprep.subr.bf16.mxu0 0
        %1060 = vmatpush2.bf16.msra.mxu0 0
        %1061 = vmatprep.subr.bf16.mxu0 0
        %1062 = vmatpush2.bf16.msra.mxu0 0
        %1063 = vmatprep.subr.bf16.mxu0 0
        %1064 = vmatpush2.bf16.msra.mxu0 0
        %1065 = vmatprep.subr.bf16.mxu0 0
        %1066 = vmatpush2.bf16.msra.mxu0 0
        %1067 = vmatprep.subr.bf16.mxu0 0
        %1068 = vmatpush2.bf16.msra.mxu0 0
        %1069 = vmatprep.subr.bf16.mxu0 0
        %1070 = vmatpush2.bf16.msra.mxu0 0
        %1071 = vmatprep.subr.bf16.mxu0 0
        %1072 = vmatpush2.bf16.msra.mxu0 0
        %1073 = vmatprep.mubr.bf16.mxu0 0
        %1074 = vmatmul.mubr.bf16.gmra.mxu0 %v1036
        %v1075 = vpop.f32.mrf.mxu0
        %v1076 = vadd.f32 0.0, %v1075
        %v1077 = vpop.f32.mrf.mxu0
        %v1078 = vpop.f32.mrf.mxu0
        %v1079 = vpop.f32.mrf.mxu0
        %1080 = vdwg.mxu0
        %v1081 = vpack.c.bf16 %v1076, %v1076
        %1083 = vrot.lane.b32.xlu0 %v723, 8
        %v1084 = vpop.permute.xlu0 %1083
        %1086 = vrot.lane.b32.xlu0 %v902, 16
        %v1087 = vpop.permute.xlu0 %1086
        %1089 = vrot.lane.b32.xlu0 %v1081, 24
        %v1090 = vpop.permute.xlu0 %1089
        %v1093 = vsel %vm435, %v544, %v1084
        %vm1094 = vcmask 130048
        %v1096 = vsel %vm1094, %v1093, %v1087
        %vm1097 = vcmask 195584
        %v1099 = vsel %vm1097, %v1096, %v1090
        %v1100 = vld [vmem:[#allocation2] sm:$0xf]
        %v1101 = vld [vmem:[#allocation2 + $0x4] sm:$0xf]
        %v1102 = vld [vmem:[#allocation2 + $0x8] sm:$0xf]
        %v1103 = vld [vmem:[#allocation2 + $0xc] sm:$0xf]
        %v1104 = vld [vmem:[#allocation5] sm:$0x1]
        %v1106 = vlaneseq
        %v1107 = vshrl.u32 %v1106, 7
        %v1108 = vsub.s32 0, %v1107
        %v1109 = vrot.slane %v1104, %v1108
        %v1115 = vunpack.c.l.b16 %v1100
        %v1116 = vunpack.c.l.b16 %v1101
        %v1117 = vunpack.c.l.b16 %v1102
        %v1118 = vunpack.c.l.b16 %v1103
        %v1119 = vpack.c.b16 %v1116, %v1115
        %v1120 = vpack.c.b16 %v1118, %v1117
        %v1123 = vsel %vm327, %v1099, 0
        %1125 = vmatprep.subr.bf16.mxu0 0
        %1126 = vmatpush1.bf16.msra.mxu0 0
        %1127 = vmatprep.subr.bf16.mxu0 0
        %1128 = vmatpush1.bf16.msra.mxu0 0
        %1129 = vmatprep.subr.bf16.mxu0 0
        %1130 = vmatpush1.bf16.msra.mxu0 0
        %1131 = vmatprep.subr.bf16.mxu0 0
        %1132 = vmatpush1.bf16.msra.mxu0 0
        %1133 = vmatprep.subr.bf16.mxu0 0
        %1134 = vmatpush1.bf16.msra.mxu0 0
        %1135 = vmatprep.subr.bf16.mxu0 0
        %1136 = vmatpush1.bf16.msra.mxu0 0
        %1137 = vmatprep.subr.bf16.mxu0 0
        %1138 = vmatpush1.bf16.msra.mxu0 %v1120
        %1139 = vmatprep.subr.bf16.mxu0 0
        %1140 = vmatpush1.bf16.msra.mxu0 %v1119
        %1141 = vmatprep.subr.bf16.mxu0 0
        %1142 = vmatpush2.bf16.msra.mxu0 0
        %1143 = vmatprep.subr.bf16.mxu0 0
        %1144 = vmatpush2.bf16.msra.mxu0 0
        %1145 = vmatprep.subr.bf16.mxu0 0
        %1146 = vmatpush2.bf16.msra.mxu0 0
        %1147 = vmatprep.subr.bf16.mxu0 0
        %1148 = vmatpush2.bf16.msra.mxu0 0
        %1149 = vmatprep.subr.bf16.mxu0 0
        %1150 = vmatpush2.bf16.msra.mxu0 0
        %1151 = vmatprep.subr.bf16.mxu0 0
        %1152 = vmatpush2.bf16.msra.mxu0 0
        %1153 = vmatprep.subr.bf16.mxu0 0
        %1154 = vmatpush2.bf16.msra.mxu0 0
        %1155 = vmatprep.subr.bf16.mxu0 0
        %1156 = vmatpush2.bf16.msra.mxu0 0
        %1157 = vmatprep.mubr.bf16.mxu0 0
        %1158 = vmatmul.mubr.bf16.gmra.mxu0 %v1123
        %v1159 = vpop.f32.mrf.mxu0
        %v1160 = vadd.f32 %v1109, %v1159
        %v1161 = vpop.f32.mrf.mxu0
        %v1162 = vpop.f32.mrf.mxu0
        %v1163 = vpop.f32.mrf.mxu0
        %1164 = vdwg.mxu0
        %1165 = vst.msk [vmem:[%s297] sm:$0xff] %vm327, %v1160
        %s1166 = sand.u32 %s183, 1
        %s1167 = scalar_lea.sflag [#allocation4], %s1166
        %s1168 = sand.u32 %s183, 1
        %s1169 = smul.addr %s1168, 8
        %s1170 = scalar_lea.vmem [#allocation7], %s1169
        // Predicated region
        $region57: #{tpu_custom_call.1} parent=47 // pred_check
          %p1171 = pneg %p193
        $region58: #{tpu_custom_call.1} parent=47 // pred_check_branch
          %1173 = sbr.rel (%p1171) target = $region60
        $region59: #{tpu_custom_call.1} parent=47 // pred_region
          %s1175 = ssub.s32 128, 128
          %1176 = vsyncadd %s1167, %s1175
          %s1177 = smul.addr %s23, 128
          %s1178 = scalar_lea.hbm %s7, %s1177
          %s1180 = sshll.u32 %s1170, 4
          %s1181 = int_to_ptr.vmem [resolvable:$true] %s1180
          %1183 = dma.vmem_to_hbm [thread:$0]  %s1181, 128, %s1178, %s1167
        $region60: #{tpu_custom_call.1} parent=47 // pred_fallthru
          _
      $region48: #{tpu_custom_call.1} parent=5 // pred_fallthru
        _
      %p1184 = scmp.le.s32.totalorder 2, %s18
      // Predicated region
      $region61: #{tpu_custom_call.1} parent=5 // pred_check
        %p1185 = pneg %p1184
      $region62: #{tpu_custom_call.1} parent=5 // pred_check_branch
        %1187 = sbr.rel (%p1185) target = $region64
      $region63: #{tpu_custom_call.1} parent=5 // pred_region
        %s1188 = ssub.s32 %s18, 2
        // Predicated region
        $region65: #{tpu_custom_call.1} parent=63 // pred_check
          %p1189 = pneg %p199
        $region66: #{tpu_custom_call.1} parent=63 // pred_check_branch
          %1191 = sbr.rel (%p1189) target = $region68
        $region67: #{tpu_custom_call.1} parent=63 // pred_region
          %s1192 = sand.u32 %s184, 1
          %s1193 = scalar_lea.sflag [#allocation4], %s1192
          %s1194 = sand.u32 %s184, 1
          %s1195 = smul.addr %s1194, 8
          %s1196 = scalar_lea.vmem [#allocation7], %s1195
          %1197 = dma.done %s1193, 128
        $region68: #{tpu_custom_call.1} parent=63 // pred_fallthru
          _
      $region64: #{tpu_custom_call.1} parent=5 // pred_fallthru
        _
    $region6: #{tpu_custom_call.1} parent=1 // loop_footer
      %s22 = sadd.s32 1, %s18
    $region7: #{tpu_custom_call.1} parent=1 // loop_footer_branch
      %17 = sbr.rel target = $region3
    $region8: #{tpu_custom_call.1} parent=1 // loop_exit
      _
    %1198 = vsyncpa [#allocation3], 1
    %s1199 = scalar_lea.sflag [#allocation3], 1
    %1200 = vsyncpa %s1199, 1
    %1201 = vsyncpa [#allocation6], 1
    %1202 = vsyncpa [#allocation4], 1
    %s1203 = scalar_lea.sflag [#allocation4], 1
    %1204 = vsyncpa %s1203, 1

</llo_original>
